<compile_context>
chip_gen: v6e
topology: v6e:2x2x1
jax: 0.10.0
libtpu: 0.0.40
codegen_flags: <defaults>
</compile_context>

<pallas_src>
import numpy as np
import jax
import jax.numpy as jnp
from jax.experimental import pallas as pl
from jax.experimental.pallas import tpu as pltpu


def _sine_encoding_kernel(x_ref, f2_ref, off_ref, o_ref):
    # x_ref:   (tm, 1) f32   positions on sublanes
    # f2_ref:  (1, D)  f32   loop-invariant [freqs, freqs]
    # off_ref: (1, D)  f32   loop-invariant [0..0, pi/2..pi/2]
    # o_ref:   (tm, D) out dtype
    phase = x_ref[...] * f2_ref[...] + off_ref[...]      # (tm, D) VPU broadcast
    # Single sin lowering + single lane-dense full-width store.
    o_ref[...] = jnp.sin(phase).astype(o_ref.dtype)


def _round_up(v: int, m: int) -> int:
    return ((v + m - 1) // m) * m


def _sublane(dtype) -> int:
    # Sublane granularity of the packed (s, 128) tile for this dtype:
    # f32 -> 8, bf16 -> 16, int8/fp8 -> 32.
    return max(8, 32 // jnp.dtype(dtype).itemsize)


def _vmem_budgets() -> tuple[int, int]:
    """(double-buffered tile budget, scoped vmem_limit_bytes), per generation."""
    try:
        cap = pltpu.get_tpu_info().vmem_capacity_bytes
    except Exception:
        cap = 0
    if cap >= (96 << 20):          # v5e / v6e class: 128 MiB VMEM per TC
        return 48 << 20, 64 << 20
    return 24 << 20, 32 << 20      # v7x class (64 MiB VMEM) or unknown: stay safe


def sine_encoding(x: jax.Array, freqs: jax.Array, *,
                  tm: int = 4096,
                  out_dtype=jnp.float32) -> jax.Array:
    """Sinusoidal positional encoding.

    x: any shape (*,), float32.
    freqs: (D/2,), float32.  (D % 128 == 0 gives fully unmasked stores.)
    returns: (*, D) in `out_dtype` (float32 default; bfloat16 is a valid
             bandwidth optimization on v5e if downstream tolerates it).
    """
    orig_shape = x.shape
    half = freqs.shape[0]
    D = 2 * half

    x_flat = x.reshape(-1).astype(jnp.float32)
    n = x_flat.shape[0]

    out_itemsize = jnp.dtype(out_dtype).itemsize
    sub = _sublane(out_dtype)

    # --- VMEM budget (double-buffered working set) ------------------------
    tile_budget, vmem_limit = _vmem_budgets()
    # Loop-invariant (1, D) f32 blocks (f2, off): sublane-padded to 8 rows,
    # double-buffered by the pipeline.
    fixed_bytes = 2 * 2 * 8 * D * 4
    budget = max(tile_budget - fixed_bytes, 1 << 20)
    # Per output row, double-buffered: D*itemsize for the (tm, D) tile plus
    # 128 lanes * 4 B for the lane-padded (tm, 1) f32 x tile.
    bytes_per_row = 2 * (D * out_itemsize + 128 * 4)
    max_tm_vmem = max(sub, (budget // bytes_per_row) // sub * sub)

    # --- Row tile selection ------------------------------------------------
    n_rounded = _round_up(max(n, 1), sub)
    tm_eff = max(sub, (min(tm, max_tm_vmem, n_rounded) // sub) * sub)
    # Give the single "parallel" grid axis >= 2 steps when possible so v7x's
    # two TensorCores both get work; no-op for large n.
    if pl.cdiv(n, tm_eff) < 2 and n_rounded >= 2 * sub:
        tm_eff = max(sub, _round_up(pl.cdiv(n, 2), sub))

    grid = (pl.cdiv(n, tm_eff),)   # ragged last block handled by Pallas masking

    # --- Operands ------------------------------------------------------------
    x2d = x_flat.reshape(n, 1)
    f32 = freqs.astype(jnp.float32)
    f2 = jnp.concatenate([f32, f32]).reshape(1, D)
    off = jnp.concatenate([
        jnp.zeros((half,), jnp.float32),
        jnp.full((half,), np.float32(np.pi / 2), dtype=jnp.float32),
    ]).reshape(1, D)

    cost = pl.CostEstimate(
        flops=2 * n * D,                                   # mul + add
        transcendentals=n * D,                             # one sin per output elem
        bytes_accessed=n * 4 + 2 * D * 4 + n * D * out_itemsize,
    )

    out = pl.pallas_call(
        _sine_encoding_kernel,
        out_shape=jax.ShapeDtypeStruct((n, D), out_dtype),
        grid_spec=pltpu.PrefetchScalarGridSpec(
            num_scalar_prefetch=0,
            grid=grid,
            in_specs=[
                pl.BlockSpec((tm_eff, 1), lambda i: (i, 0)),
                pl.BlockSpec((1, D), lambda i: (0, 0)),     # loop-invariant f2
                pl.BlockSpec((1, D), lambda i: (0, 0)),     # loop-invariant off
            ],
            out_specs=pl.BlockSpec((tm_eff, D), lambda i: (i, 0)),
        ),
        compiler_params=pltpu.CompilerParams(
            dimension_semantics=("parallel",),
            vmem_limit_bytes=vmem_limit,
        ),
        cost_estimate=cost,
    )(x2d, f2, off)

    return out.reshape(*orig_shape, D)


def make_freqs(features: int, omega: float = 1000.0) -> jax.Array:
    assert features % 2 == 0
    freqs = np.linspace(0.0, 1.0, features // 2)
    freqs = omega ** (-freqs)
    return jnp.asarray(freqs, dtype=jnp.float32)


if __name__ == "__main__":
    key = jax.random.PRNGKey(0)
    k1, k2 = jax.random.split(key)

    features = 256          # D (even); half = 128 -> lane-dense output tile
    omega = 1000.0
    freqs = make_freqs(features, omega)

    def ref(x):
        return jnp.concatenate(
            [jnp.sin(x[..., None] * freqs), jnp.cos(x[..., None] * freqs)],
            axis=-1,
        )

    # Case 1: evenly tiled rows (n = 128 -> 2 "parallel" grid steps).
    x1 = jax.random.normal(k1, (2, 64), dtype=jnp.float32) * 10.0
    e1 = jax.block_until_ready(sine_encoding(x1, freqs))
    assert e1.shape == (2, 64, features)
    np.testing.assert_allclose(np.asarray(e1), np.asarray(ref(x1)),
                               atol=3e-5, rtol=1e-5)

    # Case 2: ragged last block (n = 150 rows; no pad / out[:n] round-trip).
    x2 = jax.random.normal(k2, (3, 50), dtype=jnp.float32) * 10.0
    e2 = jax.block_until_ready(sine_encoding(x2, freqs))
    assert e2.shape == (3, 50, features)
    np.testing.assert_allclose(np.asarray(e2), np.asarray(ref(x2)),
                               atol=3e-5, rtol=1e-5)

    print("KERNEL_OK")
</pallas_src>

<mosaic_0001>
module attributes {stable_mosaic.version = 11 : i64} {
  func.func @_sine_encoding_kernel(%arg0: i32, %arg1: memref<64x1xf32, #tpu.memory_space<vmem>>, %arg2: memref<1x256xf32, #tpu.memory_space<vmem>>, %arg3: memref<1x256xf32, #tpu.memory_space<vmem>>, %arg4: memref<64x256xf32, #tpu.memory_space<vmem>>) attributes {dimension_semantics = [#tpu.dimension_semantics<parallel>], iteration_bounds = array<i64: 2>, scalar_prefetch = 0 : i64, scratch_operands = 0 : i64, tpu.core_type = #tpu.core_type<tc>, window_params = [{transform_indices = @transform_0, window_bounds = array<i64: 64, 1>}, {pipeline_mode = #tpu.pipeline_mode<synchronous>, transform_indices = @transform_1, window_bounds = array<i64: 1, 256>}, {pipeline_mode = #tpu.pipeline_mode<synchronous>, transform_indices = @transform_2, window_bounds = array<i64: 1, 256>}, {transform_indices = @transform_3, window_bounds = array<i64: 64, 256>}]} {
    %c0 = arith.constant 0 : index
    %c0_0 = arith.constant 0 : index
    %0 = vector.load %arg1[%c0, %c0_0] : memref<64x1xf32, #tpu.memory_space<vmem>>, vector<64x1xf32>
    %c0_1 = arith.constant 0 : index
    %c0_2 = arith.constant 0 : index
    %1 = vector.load %arg2[%c0_1, %c0_2] : memref<1x256xf32, #tpu.memory_space<vmem>>, vector<1x256xf32>
    %2 = vector.broadcast %0 : vector<64x1xf32> to vector<64x256xf32>
    %3 = vector.broadcast %1 : vector<1x256xf32> to vector<64x256xf32>
    %4 = arith.mulf %2, %3 : vector<64x256xf32>
    %c0_3 = arith.constant 0 : index
    %c0_4 = arith.constant 0 : index
    %5 = vector.load %arg3[%c0_3, %c0_4] : memref<1x256xf32, #tpu.memory_space<vmem>>, vector<1x256xf32>
    %6 = vector.broadcast %5 : vector<1x256xf32> to vector<64x256xf32>
    %7 = arith.addf %4, %6 : vector<64x256xf32>
    %8 = math.sin %7 : vector<64x256xf32>
    %c0_5 = arith.constant 0 : index
    %c0_6 = arith.constant 0 : index
    %9 = vector.load %arg4[%c0_5, %c0_6] : memref<64x256xf32, #tpu.memory_space<vmem>>, vector<64x256xf32>
    tpu.vector_store %arg4[%c0_5, %c0_6], %8 {strides = array<i32>} : memref<64x256xf32, #tpu.memory_space<vmem>>, vector<64x256xf32>,
    return
  }
  func.func @transform_0(%arg0: i32) -> (i32, i32) {
    %c0_i32 = arith.constant 0 : i32
    %c0_i32_0 = arith.constant 0 : i32
    return %arg0, %c0_i32 : i32, i32
  }
  func.func @transform_1(%arg0: i32) -> (i32, i32) {
    %c0_i32 = arith.constant 0 : i32
    %c0_i32_0 = arith.constant 0 : i32
    %c0_i32_1 = arith.constant 0 : i32
    return %c0_i32, %c0_i32_0 : i32, i32
  }
  func.func @transform_2(%arg0: i32) -> (i32, i32) {
    %c0_i32 = arith.constant 0 : i32
    %c0_i32_0 = arith.constant 0 : i32
    %c0_i32_1 = arith.constant 0 : i32
    return %c0_i32, %c0_i32_0 : i32, i32
  }
  func.func @transform_3(%arg0: i32) -> (i32, i32) {
    %c0_i32 = arith.constant 0 : i32
    %c0_i32_0 = arith.constant 0 : i32
    return %arg0, %c0_i32 : i32, i32
  }
}

</mosaic_0001>

<llo_original>
// kernel: tpu_custom_call.1
$region0: #{tpu_custom_call.1}
  #allocation0 [shape = 'u32[]', space=smem, size = 0x4, offset = 0x4, fixed_abs, tag = 'smem constant byte address 0x4 - core index']
  #allocation1 [shape = 'u32[144,128]{1,0:T(1,128)}', space=vmem, size = 0x12000, scoped, tag = 'internal scratch']
  %s0 = inlined_call_operand.vmem [shape: f32[128,1], index: 0, kind: input, shape index: {}]
  %s1 = inlined_call_operand.vmem [shape: f32[1,256], index: 1, kind: input, shape index: {}]
  %s2 = inlined_call_operand.vmem [shape: f32[1,256], index: 2, kind: input, shape index: {}]
  %s3 = inlined_call_operand.hbm [shape: f32[128,256], index: 3, kind: output, shape index: {}]
  %s4 = sld [smem:[#allocation0]]
  $region45: #{tpu_custom_call.1} parent=0
    _
  %s6 = ssub.s32 1, %s4
  %s7 = scalar_select 0, %s6, %s4
  $region1: #{tpu_custom_call.1} parent=0
    #allocation2 [shape = 'u8[131072]{0}', space=vmem, size = 0x20000, scoped, tag = 'output window, operand 0']
    #allocation3 [shape = 's32[2]{0}', space=sflag, size = 0x8, scoped, tag = 'scoped memory for tpu_custom_call.1']
    %8 = vsyncpa [#allocation3], 0
    %s9 = scalar_lea.sflag [#allocation3], 1
    %10 = vsyncpa %s9, 0
    loop: start=0, step=1, limit=4
    $region2: #{tpu_custom_call.1} parent=1 // loop_pre_header
      _
    $region3: #{tpu_custom_call.1} parent=1 // loop_header
      %s12 = sphi 0, %s16
      %p13 = scmp.ge.s32.totalorder %s12, 4
      %s22 = sphi 0, %s24
      %s25 = sphi 0, %s22
      %s26 = sphi 0, %s25
      %s42 = sphi 0, %s26
      %s46 = sphi 0, %s46
      %s48 = sphi 0, %s46
      %s49 = sphi 0, %s48
      %s63 = sphi 0, %s49
      %s67 = sphi 0, %s67
      %s69 = sphi 0, %s67
      %s70 = sphi 0, %s69
      %s84 = sphi 0, %s70
      %s90 = sphi 0, %s92
      %s93 = sphi 0, %s90
      %s94 = sphi 0, %s93
      %s110 = sphi 0, %s94
    $region4: #{tpu_custom_call.1} parent=1 // loop_header_branch
      %15 = sbr.rel (%p13) target = $region8
    $region5: #{tpu_custom_call.1} parent=1 // loop_body
      %s17 = ssub.s32 %s12, 1
      %s18 = ssub.s32 %s12, 2
      %s19 = sadd.s32 %s12, 1
      %s20 = ssub.s32 %s12, %s19
      %p21 = scmp.eq.s32.totalorder %s20, 0
      %s23 = sadd.s32 %s22, 1
      %s24 = scalar_select %p21, %s22, %s23
      %p27 = pneg %p21
      %p28 = scmp.eq.s32.totalorder %s12, 1
      %p29 = por %p27, %p28
      %p30 = scmp.ne.s32.totalorder %s22, %s25
      %p31 = scmp.eq.s32.totalorder %s12, 0
      %p32 = por %p30, %p31
      %p33 = scmp.ne.s32.totalorder %s22, %s25
      %p34 = scmp.eq.s32.totalorder %s17, 1
      %p35 = por %p33, %p34
      %p36 = scmp.ne.s32.totalorder %s25, %s26
      %p37 = scmp.eq.s32.totalorder %s17, 0
      %p38 = por %p36, %p37
      %p39 = scmp.ne.s32.totalorder %s25, %s26
      %p40 = scmp.eq.s32.totalorder %s18, 1
      %p41 = por %p39, %p40
      %p43 = scmp.ne.s32.totalorder %s26, %s42
      %p44 = scmp.eq.s32.totalorder %s18, 0
      %p45 = por %p43, %p44
      %s47 = sadd.s32 %s46, 1
      %p50 = scmp.eq.s32.totalorder %s12, 1
      %p51 = scmp.ne.s32.totalorder %s46, %s48
      %p52 = scmp.eq.s32.totalorder %s12, 0
      %p53 = por %p51, %p52
      %p54 = scmp.ne.s32.totalorder %s46, %s48
      %p55 = scmp.eq.s32.totalorder %s17, 1
      %p56 = por %p54, %p55
      %p57 = scmp.ne.s32.totalorder %s48, %s49
      %p58 = scmp.eq.s32.totalorder %s17, 0
      %p59 = por %p57, %p58
      %p60 = scmp.ne.s32.totalorder %s48, %s49
      %p61 = scmp.eq.s32.totalorder %s18, 1
      %p62 = por %p60, %p61
      %p64 = scmp.ne.s32.totalorder %s49, %s63
      %p65 = scmp.eq.s32.totalorder %s18, 0
      %p66 = por %p64, %p65
      %s68 = sadd.s32 %s67, 1
      %p71 = scmp.eq.s32.totalorder %s12, 1
      %p72 = scmp.ne.s32.totalorder %s67, %s69
      %p73 = scmp.eq.s32.totalorder %s12, 0
      %p74 = por %p72, %p73
      %p75 = scmp.ne.s32.totalorder %s67, %s69
      %p76 = scmp.eq.s32.totalorder %s17, 1
      %p77 = por %p75, %p76
      %p78 = scmp.ne.s32.totalorder %s69, %s70
      %p79 = scmp.eq.s32.totalorder %s17, 0
      %p80 = por %p78, %p79
      %p81 = scmp.ne.s32.totalorder %s69, %s70
      %p82 = scmp.eq.s32.totalorder %s18, 1
      %p83 = por %p81, %p82
      %p85 = scmp.ne.s32.totalorder %s70, %s84
      %p86 = scmp.eq.s32.totalorder %s18, 0
      %p87 = por %p85, %p86
      %s88 = ssub.s32 %s12, %s19
      %p89 = scmp.eq.s32.totalorder %s88, 0
      %s91 = sadd.s32 %s90, 1
      %s92 = scalar_select %p89, %s90, %s91
      %p95 = pneg %p89
      %p96 = scmp.eq.s32.totalorder %s12, 1
      %p97 = por %p95, %p96
      %p98 = scmp.ne.s32.totalorder %s90, %s93
      %p99 = scmp.eq.s32.totalorder %s12, 0
      %p100 = por %p98, %p99
      %p101 = scmp.ne.s32.totalorder %s90, %s93
      %p102 = scmp.eq.s32.totalorder %s17, 1
      %p103 = por %p101, %p102
      %p104 = scmp.ne.s32.totalorder %s93, %s94
      %p105 = scmp.eq.s32.totalorder %s17, 0
      %p106 = por %p104, %p105
      %p107 = scmp.ne.s32.totalorder %s93, %s94
      %p108 = scmp.eq.s32.totalorder %s18, 1
      %p109 = por %p107, %p108
      %p111 = scmp.ne.s32.totalorder %s94, %s110
      %p112 = scmp.eq.s32.totalorder %s18, 0
      %p113 = por %p111, %p112
      %p114 = scmp.le.s32.totalorder 1, %s12
      %p115 = scmp.lt.s32.totalorder %s12, 3
      %p116 = pnand %p114, %p115
      %p117 = pneg %p116
      // Predicated region
      $region9: #{tpu_custom_call.1} parent=5 // pred_check
        _
      $region10: #{tpu_custom_call.1} parent=5 // pred_check_branch
        %119 = sbr.rel (%p116) target = $region12
      $region11: #{tpu_custom_call.1} parent=5 // pred_region
        %s120 = ssub.s32 %s12, 1
        // Predicated region
        $region13: #{tpu_custom_call.1} parent=11 // pred_check
          %p121 = pneg %p59
        $region14: #{tpu_custom_call.1} parent=11 // pred_check_branch
          %123 = sbr.rel (%p121) target = $region16
        $region15: #{tpu_custom_call.1} parent=11 // pred_region
          _
        $region16: #{tpu_custom_call.1} parent=11 // pred_fallthru
          _
        // Predicated region
        $region17: #{tpu_custom_call.1} parent=11 // pred_check
          %p124 = pneg %p80
        $region18: #{tpu_custom_call.1} parent=11 // pred_check_branch
          %126 = sbr.rel (%p124) target = $region20
        $region19: #{tpu_custom_call.1} parent=11 // pred_region
          _
        $region20: #{tpu_custom_call.1} parent=11 // pred_fallthru
          _
      $region12: #{tpu_custom_call.1} parent=5 // pred_fallthru
        _
      %p127 = scmp.lt.s32.totalorder %s12, 2
      // Predicated region
      $region21: #{tpu_custom_call.1} parent=5 // pred_check
        %p128 = pneg %p127
      $region22: #{tpu_custom_call.1} parent=5 // pred_check_branch
        %130 = sbr.rel (%p128) target = $region24
      $region23: #{tpu_custom_call.1} parent=5 // pred_region
        // Predicated region
        $region25: #{tpu_custom_call.1} parent=23 // pred_check
          %p131 = pneg %p32
        $region26: #{tpu_custom_call.1} parent=23 // pred_check_branch
          %133 = sbr.rel (%p131) target = $region28
        $region27: #{tpu_custom_call.1} parent=23 // pred_region
          %s134 = smul.u32 8, %s12
          %p135 = scmp.lt.s32.totalorder %s134, 15
          %s136 = scalar_select %p135, %s134, 15
          %s137 = smul.addr %s136, 8
          %s138 = scalar_lea.vmem %s0, %s137
          %s139 = smul.u32 8, %s12
        $region28: #{tpu_custom_call.1} parent=23 // pred_fallthru
          _
      $region24: #{tpu_custom_call.1} parent=5 // pred_fallthru
        _
      %p140 = scmp.le.s32.totalorder 1, %s12
      %p141 = scmp.lt.s32.totalorder %s12, 3
      %p142 = pnand %p140, %p141
      %p143 = pneg %p142
      // Predicated region
      $region29: #{tpu_custom_call.1} parent=5 // pred_check
        _
      $region30: #{tpu_custom_call.1} parent=5 // pred_check_branch
        %145 = sbr.rel (%p142) target = $region32
      $region31: #{tpu_custom_call.1} parent=5 // pred_region
        %s146 = ssub.s32 %s12, 1
        %s147 = smul.u32 8, %s17
        %p148 = scmp.lt.s32.totalorder %s147, 15
        %s149 = scalar_select %p148, %s147, 15
        %s150 = smul.addr %s149, 8
        %s151 = scalar_lea.vmem %s0, %s150
        %p152 = pneg %p38
        %p153 = pneg %p35
        %p154 = pneg %p59
        %p155 = pneg %p56
        %p156 = pneg %p80
        %p157 = pneg %p77
        %p158 = pneg %p106
        %p159 = pneg %p103
        %s160 = sand.u32 %s93, 1
        %s161 = scalar_lea.sflag [#allocation3], %s160
        %s162 = sand.u32 %s93, 1
        %s163 = smul.addr %s162, 128
        %s164 = scalar_lea.vmem [#allocation2], %s163
        %s165 = smul.u32 8, %s17
        %p166 = scmp.lt.s32.totalorder %s165, 15
        %s167 = scalar_select %p166, %s165, 15
        %s168 = smul.addr %s167, 8
        %s169 = scalar_lea.vmem %s0, %s168
        %s170 = smul.u32 8, %s17
        %s171 = smul.u32 8, %s17
        %v172 = vld [vmem:[%s169] sm:$0xff]
        %v173 = vld [vmem:[%s169 + $0x8] sm:$0xff]
        %v174 = vld [vmem:[%s169 + $0x10] sm:$0xff]
        %v175 = vld [vmem:[%s169 + $0x18] sm:$0xff]
        %v176 = vld [vmem:[%s169 + $0x20] sm:$0xff]
        %v177 = vld [vmem:[%s169 + $0x28] sm:$0xff]
        %v178 = vld [vmem:[%s169 + $0x30] sm:$0xff]
        %v179 = vld [vmem:[%s169 + $0x38] sm:$0xff]
        %v180 = vld [vmem:[%s1] sm:$0x3]
        %182 = vset.pattern.permute.xlu0 0
        %183 = vperm.xlu0 %182, %v172
        %v184 = vpop.permute.xlu0 %183
        %187 = vset.pattern.permute.xlu0 0
        %188 = vperm.xlu0 %187, %v173
        %v189 = vpop.permute.xlu0 %188
        %192 = vset.pattern.permute.xlu0 0
        %193 = vperm.xlu0 %192, %v174
        %v194 = vpop.permute.xlu0 %193
        %197 = vset.pattern.permute.xlu0 0
        %198 = vperm.xlu0 %197, %v175
        %v199 = vpop.permute.xlu0 %198
        %202 = vset.pattern.permute.xlu0 0
        %203 = vperm.xlu0 %202, %v176
        %v204 = vpop.permute.xlu0 %203
        %207 = vset.pattern.permute.xlu0 0
        %208 = vperm.xlu0 %207, %v177
        %v209 = vpop.permute.xlu0 %208
        %212 = vset.pattern.permute.xlu0 0
        %213 = vperm.xlu0 %212, %v178
        %v214 = vpop.permute.xlu0 %213
        %217 = vset.pattern.permute.xlu0 0
        %218 = vperm.xlu0 %217, %v179
        %v219 = vpop.permute.xlu0 %218
        %v222 = vlaneseq
        %v223 = vshrl.u32 %v222, 7
        %v224 = vsub.s32 0, %v223
        %v225 = vrot.slane %v180, %v224
        %v226 = vlaneseq
        %v227 = vshrl.u32 %v226, 7
        %v228 = vsub.s32 1, %v227
        %v229 = vrot.slane %v180, %v228
        %v232 = vmul.f32 %v184, %v225
        %v233 = vmul.f32 %v184, %v229
        %v234 = vmul.f32 %v189, %v225
        %v235 = vmul.f32 %v189, %v229
        %v236 = vmul.f32 %v194, %v225
        %v237 = vmul.f32 %v194, %v229
        %v238 = vmul.f32 %v199, %v225
        %v239 = vmul.f32 %v199, %v229
        %v240 = vmul.f32 %v204, %v225
        %v241 = vmul.f32 %v204, %v229
        %v242 = vmul.f32 %v209, %v225
        %v243 = vmul.f32 %v209, %v229
        %v244 = vmul.f32 %v214, %v225
        %v245 = vmul.f32 %v214, %v229
        %v246 = vmul.f32 %v219, %v225
        %v247 = vmul.f32 %v219, %v229
        %v248 = vld [vmem:[%s2] sm:$0x3]
        %v250 = vlaneseq
        %v251 = vshrl.u32 %v250, 7
        %v252 = vsub.s32 0, %v251
        %v253 = vrot.slane %v248, %v252
        %v254 = vlaneseq
        %v255 = vshrl.u32 %v254, 7
        %v256 = vsub.s32 1, %v255
        %v257 = vrot.slane %v248, %v256
        %v260 = vadd.f32 %v232, %v253
        %v261 = vadd.f32 %v233, %v257
        %v262 = vadd.f32 %v234, %v253
        %v263 = vadd.f32 %v235, %v257
        %v264 = vadd.f32 %v236, %v253
        %v265 = vadd.f32 %v237, %v257
        %v266 = vadd.f32 %v238, %v253
        %v267 = vadd.f32 %v239, %v257
        %v268 = vadd.f32 %v240, %v253
        %v269 = vadd.f32 %v241, %v257
        %v270 = vadd.f32 %v242, %v253
        %v271 = vadd.f32 %v243, %v257
        %v272 = vadd.f32 %v244, %v253
        %v273 = vadd.f32 %v245, %v257
        %v274 = vadd.f32 %v246, %v253
        %v275 = vadd.f32 %v247, %v257
        %v276 = vand.u32 2147483647, %v260
        %vm277 = vcmp.le.f32.partialorder %v276, 0.7853982
        %vm278 = vcmp.lt.s32.totalorder %v260, 0
        %v279 = vand.u32 %v260, 2139095040
        %v280 = vshrl.u32 %v279, 23
        %v281 = vsub.s32 %v280, 127
        %v282 = vand.u32 2147483647, %v260
        %v283 = vand.u32 %v282, 8388607
        %v284 = vor.u32 %v283, 8388608
        %v285 = vsub.s32 0, %v284
        %v286 = vadd.s32 %v281, 1
        %vm287 = vcmp.gt.s32.totalorder %v286, 0
        %v288 = vsel %vm287, %v286, 0
        %v289 = vshrl.u32 %v288, 5
        %v290 = vand.u32 %v288, 31
        %v291 = vsub.s32 32, %v290
        %v292 = vshrl.u32 683565275, %v291
        %v293 = vshll.u32 683565275, %v290
        %v294 = vshrl.u32 2475754826, %v291
        %v295 = vor.u32 %v293, %v294
        %v296 = vshll.u32 2475754826, %v290
        %v297 = vshrl.u32 2131351028, %v291
        %v298 = vor.u32 %v296, %v297
        %v299 = vshll.u32 2131351028, %v290
        %v300 = vshrl.u32 2102212464, %v291
        %v301 = vor.u32 %v299, %v300
        %v302 = vshll.u32 2102212464, %v290
        %v303 = vshrl.u32 920167782, %v291
        %v304 = vor.u32 %v302, %v303
        %v305 = vshll.u32 920167782, %v290
        %v306 = vshrl.u32 1326507024, %v291
        %v307 = vor.u32 %v305, %v306
        %vm308 = vcmp.lt.s32.totalorder %v289, 1
        %vm309 = vcmp.lt.s32.totalorder %v289, 2
        %vm310 = vcmp.lt.s32.totalorder %v289, 3
        %vm311 = vcmp.lt.s32.totalorder %v289, 4
        %v312 = vsel %vm308, %v292, %v295
        %v313 = vsel %vm311, %v301, 2102212464
        %v314 = vsel %vm310, %v298, %v313
        %v315 = vsel %vm309, %v312, %v314
        %v316 = vsel %vm308, %v295, %v298
        %v317 = vsel %vm311, %v304, 920167782
        %v318 = vsel %vm310, %v301, %v317
        %v319 = vsel %vm309, %v316, %v318
        %v320 = vsel %vm308, %v298, %v301
        %v321 = vsel %vm311, %v307, 1326507024
        %v322 = vsel %vm310, %v304, %v321
        %v323 = vsel %vm309, %v320, %v322
        %v324 = vshll.u32 %v284, 8
        %v325 = vmul.u32.u64.compose %v324, %v323
        %v326 = vextract.low.u32 %v325
        %v327 = vextract.high.u32 %v325
        %v328 = vmul.u32.u64.compose %v324, %v319
        %v329 = vextract.low.u32 %v328
        %v330 = vextract.high.u32 %v328
        %v331 = vmul.u32 %v324, %v315
        %v332 = vadd.s32 %v327, %v329
        %vm333 = vc.u32 %v327, %v329
        %v334 = vadd.s32 %v330, 1
        %v335 = vsel %vm333, %v334, %v330
        %v336 = vadd.s32 %v331, %v335
        %v337 = vadd.s32 %v336, 536870912
        %v338 = vshrl.u32 %v337, 30
        %v339 = vshll.u32 %v338, 30
        %v340 = vsub.s32 %v336, %v339
        %vm341 = vcmp.lt.s32.totalorder %v340, 0
        %v342 = vsub.s32 0, %v340
        %v343 = vsel %vm341, %v342, %v340
        %v344 = vclz %v343
        %v345 = vsub.s32 %v344, 2
        %vm346 = vcmp.gt.s32.totalorder 0, %v345
        %v347 = vsel %vm346, 0, %v345
        %v348 = vsub.s32 32, %v347
        %v349 = vshll.u32 %v340, %v347
        %v350 = vshrl.u32 %v332, %v348
        %v351 = vor.u32 %v349, %v350
        %v352 = vsub.s32 4294967266, %v347
        %v353 = vadd.s32 %v352, 127
        %v354 = vshll.u32 %v353, 23
        %v355 = vor.u32 4788187, %v354
        %v356 = vand.u32 2147483647, %v355
        %v358 = vcvt.s32.f32 %v351
        %v359 = vmul.f32 %v358, %v356
        %v360 = vxor.u32 %v359, 2147483648
        %v361 = vsel %vm278, %v360, %v359
        %v362 = vsub.s32 4, %v338
        %v363 = vsel %vm278, %v362, %v338
        %v364 = vsel %vm277, %v260, %v361
        %v365 = vsel %vm277, 0, %v363
        %v366 = vcosq.f32.pop %v364
        %v367 = vsinq.f32.pop %v364
        %vm368 = vweird.f32 %v260
        %v369 = vadd.s32 %v365, 3
        %v370 = vand.u32 %v369, 3
        %vm371 = vcmp.lt.s32.totalorder %v370, 2
        %vm372 = vcmp.eq.s32.totalorder %v370, 0
        %v373 = vxor.u32 %v367, 2147483648
        %v374 = vsel %vm372, %v366, %v373
        %vm375 = vcmp.eq.s32.totalorder %v370, 2
        %v376 = vxor.u32 %v366, 2147483648
        %v377 = vsel %vm375, %v376, %v367
        %v378 = vsel %vm371, %v374, %v377
        %v379 = vsel %vm368, nan, %v378
        %v380 = vand.u32 2147483647, %v261
        %vm381 = vcmp.le.f32.partialorder %v380, 0.7853982
        %vm382 = vcmp.lt.s32.totalorder %v261, 0
        %v383 = vand.u32 %v261, 2139095040
        %v384 = vshrl.u32 %v383, 23
        %v385 = vsub.s32 %v384, 127
        %v386 = vand.u32 2147483647, %v261
        %v387 = vand.u32 %v386, 8388607
        %v388 = vor.u32 %v387, 8388608
        %v389 = vsub.s32 0, %v388
        %v390 = vadd.s32 %v385, 1
        %vm391 = vcmp.gt.s32.totalorder %v390, 0
        %v392 = vsel %vm391, %v390, 0
        %v393 = vshrl.u32 %v392, 5
        %v394 = vand.u32 %v392, 31
        %v395 = vsub.s32 32, %v394
        %v396 = vshrl.u32 683565275, %v395
        %v397 = vshll.u32 683565275, %v394
        %v398 = vshrl.u32 2475754826, %v395
        %v399 = vor.u32 %v397, %v398
        %v400 = vshll.u32 2475754826, %v394
        %v401 = vshrl.u32 2131351028, %v395
        %v402 = vor.u32 %v400, %v401
        %v403 = vshll.u32 2131351028, %v394
        %v404 = vshrl.u32 2102212464, %v395
        %v405 = vor.u32 %v403, %v404
        %v406 = vshll.u32 2102212464, %v394
        %v407 = vshrl.u32 920167782, %v395
        %v408 = vor.u32 %v406, %v407
        %v409 = vshll.u32 920167782, %v394
        %v410 = vshrl.u32 1326507024, %v395
        %v411 = vor.u32 %v409, %v410
        %vm412 = vcmp.lt.s32.totalorder %v393, 1
        %vm413 = vcmp.lt.s32.totalorder %v393, 2
        %vm414 = vcmp.lt.s32.totalorder %v393, 3
        %vm415 = vcmp.lt.s32.totalorder %v393, 4
        %v416 = vsel %vm412, %v396, %v399
        %v417 = vsel %vm415, %v405, 2102212464
        %v418 = vsel %vm414, %v402, %v417
        %v419 = vsel %vm413, %v416, %v418
        %v420 = vsel %vm412, %v399, %v402
        %v421 = vsel %vm415, %v408, 920167782
        %v422 = vsel %vm414, %v405, %v421
        %v423 = vsel %vm413, %v420, %v422
        %v424 = vsel %vm412, %v402, %v405
        %v425 = vsel %vm415, %v411, 1326507024
        %v426 = vsel %vm414, %v408, %v425
        %v427 = vsel %vm413, %v424, %v426
        %v428 = vshll.u32 %v388, 8
        %v429 = vmul.u32.u64.compose %v428, %v427
        %v430 = vextract.low.u32 %v429
        %v431 = vextract.high.u32 %v429
        %v432 = vmul.u32.u64.compose %v428, %v423
        %v433 = vextract.low.u32 %v432
        %v434 = vextract.high.u32 %v432
        %v435 = vmul.u32 %v428, %v419
        %v436 = vadd.s32 %v431, %v433
        %vm437 = vc.u32 %v431, %v433
        %v438 = vadd.s32 %v434, 1
        %v439 = vsel %vm437, %v438, %v434
        %v440 = vadd.s32 %v435, %v439
        %v441 = vadd.s32 %v440, 536870912
        %v442 = vshrl.u32 %v441, 30
        %v443 = vshll.u32 %v442, 30
        %v444 = vsub.s32 %v440, %v443
        %vm445 = vcmp.lt.s32.totalorder %v444, 0
        %v446 = vsub.s32 0, %v444
        %v447 = vsel %vm445, %v446, %v444
        %v448 = vclz %v447
        %v449 = vsub.s32 %v448, 2
        %vm450 = vcmp.gt.s32.totalorder 0, %v449
        %v451 = vsel %vm450, 0, %v449
        %v452 = vsub.s32 32, %v451
        %v453 = vshll.u32 %v444, %v451
        %v454 = vshrl.u32 %v436, %v452
        %v455 = vor.u32 %v453, %v454
        %v456 = vsub.s32 4294967266, %v451
        %v457 = vadd.s32 %v456, 127
        %v458 = vshll.u32 %v457, 23
        %v459 = vor.u32 4788187, %v458
        %v460 = vand.u32 2147483647, %v459
        %v462 = vcvt.s32.f32 %v455
        %v463 = vmul.f32 %v462, %v460
        %v464 = vxor.u32 %v463, 2147483648
        %v465 = vsel %vm382, %v464, %v463
        %v466 = vsub.s32 4, %v442
        %v467 = vsel %vm382, %v466, %v442
        %v468 = vsel %vm381, %v261, %v465
        %v469 = vsel %vm381, 0, %v467
        %v470 = vcosq.f32.pop %v468
        %v471 = vsinq.f32.pop %v468
        %vm472 = vweird.f32 %v261
        %v473 = vadd.s32 %v469, 3
        %v474 = vand.u32 %v473, 3
        %vm475 = vcmp.lt.s32.totalorder %v474, 2
        %vm476 = vcmp.eq.s32.totalorder %v474, 0
        %v477 = vxor.u32 %v471, 2147483648
        %v478 = vsel %vm476, %v470, %v477
        %vm479 = vcmp.eq.s32.totalorder %v474, 2
        %v480 = vxor.u32 %v470, 2147483648
        %v481 = vsel %vm479, %v480, %v471
        %v482 = vsel %vm475, %v478, %v481
        %v483 = vsel %vm472, nan, %v482
        %v484 = vand.u32 2147483647, %v262
        %vm485 = vcmp.le.f32.partialorder %v484, 0.7853982
        %vm486 = vcmp.lt.s32.totalorder %v262, 0
        %v487 = vand.u32 %v262, 2139095040
        %v488 = vshrl.u32 %v487, 23
        %v489 = vsub.s32 %v488, 127
        %v490 = vand.u32 2147483647, %v262
        %v491 = vand.u32 %v490, 8388607
        %v492 = vor.u32 %v491, 8388608
        %v493 = vsub.s32 0, %v492
        %v494 = vadd.s32 %v489, 1
        %vm495 = vcmp.gt.s32.totalorder %v494, 0
        %v496 = vsel %vm495, %v494, 0
        %v497 = vshrl.u32 %v496, 5
        %v498 = vand.u32 %v496, 31
        %v499 = vsub.s32 32, %v498
        %v500 = vshrl.u32 683565275, %v499
        %v501 = vshll.u32 683565275, %v498
        %v502 = vshrl.u32 2475754826, %v499
        %v503 = vor.u32 %v501, %v502
        %v504 = vshll.u32 2475754826, %v498
        %v505 = vshrl.u32 2131351028, %v499
        %v506 = vor.u32 %v504, %v505
        %v507 = vshll.u32 2131351028, %v498
        %v508 = vshrl.u32 2102212464, %v499
        %v509 = vor.u32 %v507, %v508
        %v510 = vshll.u32 2102212464, %v498
        %v511 = vshrl.u32 920167782, %v499
        %v512 = vor.u32 %v510, %v511
        %v513 = vshll.u32 920167782, %v498
        %v514 = vshrl.u32 1326507024, %v499
        %v515 = vor.u32 %v513, %v514
        %vm516 = vcmp.lt.s32.totalorder %v497, 1
        %vm517 = vcmp.lt.s32.totalorder %v497, 2
        %vm518 = vcmp.lt.s32.totalorder %v497, 3
        %vm519 = vcmp.lt.s32.totalorder %v497, 4
        %v520 = vsel %vm516, %v500, %v503
        %v521 = vsel %vm519, %v509, 2102212464
        %v522 = vsel %vm518, %v506, %v521
        %v523 = vsel %vm517, %v520, %v522
        %v524 = vsel %vm516, %v503, %v506
        %v525 = vsel %vm519, %v512, 920167782
        %v526 = vsel %vm518, %v509, %v525
        %v527 = vsel %vm517, %v524, %v526
        %v528 = vsel %vm516, %v506, %v509
        %v529 = vsel %vm519, %v515, 1326507024
        %v530 = vsel %vm518, %v512, %v529
        %v531 = vsel %vm517, %v528, %v530
        %v532 = vshll.u32 %v492, 8
        %v533 = vmul.u32.u64.compose %v532, %v531
        %v534 = vextract.low.u32 %v533
        %v535 = vextract.high.u32 %v533
        %v536 = vmul.u32.u64.compose %v532, %v527
        %v537 = vextract.low.u32 %v536
        %v538 = vextract.high.u32 %v536
        %v539 = vmul.u32 %v532, %v523
        %v540 = vadd.s32 %v535, %v537
        %vm541 = vc.u32 %v535, %v537
        %v542 = vadd.s32 %v538, 1
        %v543 = vsel %vm541, %v542, %v538
        %v544 = vadd.s32 %v539, %v543
        %v545 = vadd.s32 %v544, 536870912
        %v546 = vshrl.u32 %v545, 30
        %v547 = vshll.u32 %v546, 30
        %v548 = vsub.s32 %v544, %v547
        %vm549 = vcmp.lt.s32.totalorder %v548, 0
        %v550 = vsub.s32 0, %v548
        %v551 = vsel %vm549, %v550, %v548
        %v552 = vclz %v551
        %v553 = vsub.s32 %v552, 2
        %vm554 = vcmp.gt.s32.totalorder 0, %v553
        %v555 = vsel %vm554, 0, %v553
        %v556 = vsub.s32 32, %v555
        %v557 = vshll.u32 %v548, %v555
        %v558 = vshrl.u32 %v540, %v556
        %v559 = vor.u32 %v557, %v558
        %v560 = vsub.s32 4294967266, %v555
        %v561 = vadd.s32 %v560, 127
        %v562 = vshll.u32 %v561, 23
        %v563 = vor.u32 4788187, %v562
        %v564 = vand.u32 2147483647, %v563
        %v566 = vcvt.s32.f32 %v559
        %v567 = vmul.f32 %v566, %v564
        %v568 = vxor.u32 %v567, 2147483648
        %v569 = vsel %vm486, %v568, %v567
        %v570 = vsub.s32 4, %v546
        %v571 = vsel %vm486, %v570, %v546
        %v572 = vsel %vm485, %v262, %v569
        %v573 = vsel %vm485, 0, %v571
        %v574 = vcosq.f32.pop %v572
        %v575 = vsinq.f32.pop %v572
        %vm576 = vweird.f32 %v262
        %v577 = vadd.s32 %v573, 3
        %v578 = vand.u32 %v577, 3
        %vm579 = vcmp.lt.s32.totalorder %v578, 2
        %vm580 = vcmp.eq.s32.totalorder %v578, 0
        %v581 = vxor.u32 %v575, 2147483648
        %v582 = vsel %vm580, %v574, %v581
        %vm583 = vcmp.eq.s32.totalorder %v578, 2
        %v584 = vxor.u32 %v574, 2147483648
        %v585 = vsel %vm583, %v584, %v575
        %v586 = vsel %vm579, %v582, %v585
        %v587 = vsel %vm576, nan, %v586
        %v588 = vand.u32 2147483647, %v263
        %vm589 = vcmp.le.f32.partialorder %v588, 0.7853982
        %vm590 = vcmp.lt.s32.totalorder %v263, 0
        %v591 = vand.u32 %v263, 2139095040
        %v592 = vshrl.u32 %v591, 23
        %v593 = vsub.s32 %v592, 127
        %v594 = vand.u32 2147483647, %v263
        %v595 = vand.u32 %v594, 8388607
        %v596 = vor.u32 %v595, 8388608
        %v597 = vsub.s32 0, %v596
        %v598 = vadd.s32 %v593, 1
        %vm599 = vcmp.gt.s32.totalorder %v598, 0
        %v600 = vsel %vm599, %v598, 0
        %v601 = vshrl.u32 %v600, 5
        %v602 = vand.u32 %v600, 31
        %v603 = vsub.s32 32, %v602
        %v604 = vshrl.u32 683565275, %v603
        %v605 = vshll.u32 683565275, %v602
        %v606 = vshrl.u32 2475754826, %v603
        %v607 = vor.u32 %v605, %v606
        %v608 = vshll.u32 2475754826, %v602
        %v609 = vshrl.u32 2131351028, %v603
        %v610 = vor.u32 %v608, %v609
        %v611 = vshll.u32 2131351028, %v602
        %v612 = vshrl.u32 2102212464, %v603
        %v613 = vor.u32 %v611, %v612
        %v614 = vshll.u32 2102212464, %v602
        %v615 = vshrl.u32 920167782, %v603
        %v616 = vor.u32 %v614, %v615
        %v617 = vshll.u32 920167782, %v602
        %v618 = vshrl.u32 1326507024, %v603
        %v619 = vor.u32 %v617, %v618
        %vm620 = vcmp.lt.s32.totalorder %v601, 1
        %vm621 = vcmp.lt.s32.totalorder %v601, 2
        %vm622 = vcmp.lt.s32.totalorder %v601, 3
        %vm623 = vcmp.lt.s32.totalorder %v601, 4
        %v624 = vsel %vm620, %v604, %v607
        %v625 = vsel %vm623, %v613, 2102212464
        %v626 = vsel %vm622, %v610, %v625
        %v627 = vsel %vm621, %v624, %v626
        %v628 = vsel %vm620, %v607, %v610
        %v629 = vsel %vm623, %v616, 920167782
        %v630 = vsel %vm622, %v613, %v629
        %v631 = vsel %vm621, %v628, %v630
        %v632 = vsel %vm620, %v610, %v613
        %v633 = vsel %vm623, %v619, 1326507024
        %v634 = vsel %vm622, %v616, %v633
        %v635 = vsel %vm621, %v632, %v634
        %v636 = vshll.u32 %v596, 8
        %v637 = vmul.u32.u64.compose %v636, %v635
        %v638 = vextract.low.u32 %v637
        %v639 = vextract.high.u32 %v637
        %v640 = vmul.u32.u64.compose %v636, %v631
        %v641 = vextract.low.u32 %v640
        %v642 = vextract.high.u32 %v640
        %v643 = vmul.u32 %v636, %v627
        %v644 = vadd.s32 %v639, %v641
        %vm645 = vc.u32 %v639, %v641
        %v646 = vadd.s32 %v642, 1
        %v647 = vsel %vm645, %v646, %v642
        %v648 = vadd.s32 %v643, %v647
        %v649 = vadd.s32 %v648, 536870912
        %v650 = vshrl.u32 %v649, 30
        %v651 = vshll.u32 %v650, 30
        %v652 = vsub.s32 %v648, %v651
        %vm653 = vcmp.lt.s32.totalorder %v652, 0
        %v654 = vsub.s32 0, %v652
        %v655 = vsel %vm653, %v654, %v652
        %v656 = vclz %v655
        %v657 = vsub.s32 %v656, 2
        %vm658 = vcmp.gt.s32.totalorder 0, %v657
        %v659 = vsel %vm658, 0, %v657
        %v660 = vsub.s32 32, %v659
        %v661 = vshll.u32 %v652, %v659
        %v662 = vshrl.u32 %v644, %v660
        %v663 = vor.u32 %v661, %v662
        %v664 = vsub.s32 4294967266, %v659
        %v665 = vadd.s32 %v664, 127
        %v666 = vshll.u32 %v665, 23
        %v667 = vor.u32 4788187, %v666
        %v668 = vand.u32 2147483647, %v667
        %v670 = vcvt.s32.f32 %v663
        %v671 = vmul.f32 %v670, %v668
        %v672 = vxor.u32 %v671, 2147483648
        %v673 = vsel %vm590, %v672, %v671
        %v674 = vsub.s32 4, %v650
        %v675 = vsel %vm590, %v674, %v650
        %v676 = vsel %vm589, %v263, %v673
        %v677 = vsel %vm589, 0, %v675
        %v678 = vcosq.f32.pop %v676
        %v679 = vsinq.f32.pop %v676
        %vm680 = vweird.f32 %v263
        %v681 = vadd.s32 %v677, 3
        %v682 = vand.u32 %v681, 3
        %vm683 = vcmp.lt.s32.totalorder %v682, 2
        %vm684 = vcmp.eq.s32.totalorder %v682, 0
        %v685 = vxor.u32 %v679, 2147483648
        %v686 = vsel %vm684, %v678, %v685
        %vm687 = vcmp.eq.s32.totalorder %v682, 2
        %v688 = vxor.u32 %v678, 2147483648
        %v689 = vsel %vm687, %v688, %v679
        %v690 = vsel %vm683, %v686, %v689
        %v691 = vsel %vm680, nan, %v690
        %v692 = vand.u32 2147483647, %v264
        %vm693 = vcmp.le.f32.partialorder %v692, 0.7853982
        %vm694 = vcmp.lt.s32.totalorder %v264, 0
        %v695 = vand.u32 %v264, 2139095040
        %v696 = vshrl.u32 %v695, 23
        %v697 = vsub.s32 %v696, 127
        %v698 = vand.u32 2147483647, %v264
        %v699 = vand.u32 %v698, 8388607
        %v700 = vor.u32 %v699, 8388608
        %v701 = vsub.s32 0, %v700
        %v702 = vadd.s32 %v697, 1
        %vm703 = vcmp.gt.s32.totalorder %v702, 0
        %v704 = vsel %vm703, %v702, 0
        %v705 = vshrl.u32 %v704, 5
        %v706 = vand.u32 %v704, 31
        %v707 = vsub.s32 32, %v706
        %v708 = vshrl.u32 683565275, %v707
        %v709 = vshll.u32 683565275, %v706
        %v710 = vshrl.u32 2475754826, %v707
        %v711 = vor.u32 %v709, %v710
        %v712 = vshll.u32 2475754826, %v706
        %v713 = vshrl.u32 2131351028, %v707
        %v714 = vor.u32 %v712, %v713
        %v715 = vshll.u32 2131351028, %v706
        %v716 = vshrl.u32 2102212464, %v707
        %v717 = vor.u32 %v715, %v716
        %v718 = vshll.u32 2102212464, %v706
        %v719 = vshrl.u32 920167782, %v707
        %v720 = vor.u32 %v718, %v719
        %v721 = vshll.u32 920167782, %v706
        %v722 = vshrl.u32 1326507024, %v707
        %v723 = vor.u32 %v721, %v722
        %vm724 = vcmp.lt.s32.totalorder %v705, 1
        %vm725 = vcmp.lt.s32.totalorder %v705, 2
        %vm726 = vcmp.lt.s32.totalorder %v705, 3
        %vm727 = vcmp.lt.s32.totalorder %v705, 4
        %v728 = vsel %vm724, %v708, %v711
        %v729 = vsel %vm727, %v717, 2102212464
        %v730 = vsel %vm726, %v714, %v729
        %v731 = vsel %vm725, %v728, %v730
        %v732 = vsel %vm724, %v711, %v714
        %v733 = vsel %vm727, %v720, 920167782
        %v734 = vsel %vm726, %v717, %v733
        %v735 = vsel %vm725, %v732, %v734
        %v736 = vsel %vm724, %v714, %v717
        %v737 = vsel %vm727, %v723, 1326507024
        %v738 = vsel %vm726, %v720, %v737
        %v739 = vsel %vm725, %v736, %v738
        %v740 = vshll.u32 %v700, 8
        %v741 = vmul.u32.u64.compose %v740, %v739
        %v742 = vextract.low.u32 %v741
        %v743 = vextract.high.u32 %v741
        %v744 = vmul.u32.u64.compose %v740, %v735
        %v745 = vextract.low.u32 %v744
        %v746 = vextract.high.u32 %v744
        %v747 = vmul.u32 %v740, %v731
        %v748 = vadd.s32 %v743, %v745
        %vm749 = vc.u32 %v743, %v745
        %v750 = vadd.s32 %v746, 1
        %v751 = vsel %vm749, %v750, %v746
        %v752 = vadd.s32 %v747, %v751
        %v753 = vadd.s32 %v752, 536870912
        %v754 = vshrl.u32 %v753, 30
        %v755 = vshll.u32 %v754, 30
        %v756 = vsub.s32 %v752, %v755
        %vm757 = vcmp.lt.s32.totalorder %v756, 0
        %v758 = vsub.s32 0, %v756
        %v759 = vsel %vm757, %v758, %v756
        %v760 = vclz %v759
        %v761 = vsub.s32 %v760, 2
        %vm762 = vcmp.gt.s32.totalorder 0, %v761
        %v763 = vsel %vm762, 0, %v761
        %v764 = vsub.s32 32, %v763
        %v765 = vshll.u32 %v756, %v763
        %v766 = vshrl.u32 %v748, %v764
        %v767 = vor.u32 %v765, %v766
        %v768 = vsub.s32 4294967266, %v763
        %v769 = vadd.s32 %v768, 127
        %v770 = vshll.u32 %v769, 23
        %v771 = vor.u32 4788187, %v770
        %v772 = vand.u32 2147483647, %v771
        %v774 = vcvt.s32.f32 %v767
        %v775 = vmul.f32 %v774, %v772
        %v776 = vxor.u32 %v775, 2147483648
        %v777 = vsel %vm694, %v776, %v775
        %v778 = vsub.s32 4, %v754
        %v779 = vsel %vm694, %v778, %v754
        %v780 = vsel %vm693, %v264, %v777
        %v781 = vsel %vm693, 0, %v779
        %v782 = vcosq.f32.pop %v780
        %v783 = vsinq.f32.pop %v780
        %vm784 = vweird.f32 %v264
        %v785 = vadd.s32 %v781, 3
        %v786 = vand.u32 %v785, 3
        %vm787 = vcmp.lt.s32.totalorder %v786, 2
        %vm788 = vcmp.eq.s32.totalorder %v786, 0
        %v789 = vxor.u32 %v783, 2147483648
        %v790 = vsel %vm788, %v782, %v789
        %vm791 = vcmp.eq.s32.totalorder %v786, 2
        %v792 = vxor.u32 %v782, 2147483648
        %v793 = vsel %vm791, %v792, %v783
        %v794 = vsel %vm787, %v790, %v793
        %v795 = vsel %vm784, nan, %v794
        %v796 = vand.u32 2147483647, %v265
        %vm797 = vcmp.le.f32.partialorder %v796, 0.7853982
        %vm798 = vcmp.lt.s32.totalorder %v265, 0
        %v799 = vand.u32 %v265, 2139095040
        %v800 = vshrl.u32 %v799, 23
        %v801 = vsub.s32 %v800, 127
        %v802 = vand.u32 2147483647, %v265
        %v803 = vand.u32 %v802, 8388607
        %v804 = vor.u32 %v803, 8388608
        %v805 = vsub.s32 0, %v804
        %v806 = vadd.s32 %v801, 1
        %vm807 = vcmp.gt.s32.totalorder %v806, 0
        %v808 = vsel %vm807, %v806, 0
        %v809 = vshrl.u32 %v808, 5
        %v810 = vand.u32 %v808, 31
        %v811 = vsub.s32 32, %v810
        %v812 = vshrl.u32 683565275, %v811
        %v813 = vshll.u32 683565275, %v810
        %v814 = vshrl.u32 2475754826, %v811
        %v815 = vor.u32 %v813, %v814
        %v816 = vshll.u32 2475754826, %v810
        %v817 = vshrl.u32 2131351028, %v811
        %v818 = vor.u32 %v816, %v817
        %v819 = vshll.u32 2131351028, %v810
        %v820 = vshrl.u32 2102212464, %v811
        %v821 = vor.u32 %v819, %v820
        %v822 = vshll.u32 2102212464, %v810
        %v823 = vshrl.u32 920167782, %v811
        %v824 = vor.u32 %v822, %v823
        %v825 = vshll.u32 920167782, %v810
        %v826 = vshrl.u32 1326507024, %v811
        %v827 = vor.u32 %v825, %v826
        %vm828 = vcmp.lt.s32.totalorder %v809, 1
        %vm829 = vcmp.lt.s32.totalorder %v809, 2
        %vm830 = vcmp.lt.s32.totalorder %v809, 3
        %vm831 = vcmp.lt.s32.totalorder %v809, 4
        %v832 = vsel %vm828, %v812, %v815
        %v833 = vsel %vm831, %v821, 2102212464
        %v834 = vsel %vm830, %v818, %v833
        %v835 = vsel %vm829, %v832, %v834
        %v836 = vsel %vm828, %v815, %v818
        %v837 = vsel %vm831, %v824, 920167782
        %v838 = vsel %vm830, %v821, %v837
        %v839 = vsel %vm829, %v836, %v838
        %v840 = vsel %vm828, %v818, %v821
        %v841 = vsel %vm831, %v827, 1326507024
        %v842 = vsel %vm830, %v824, %v841
        %v843 = vsel %vm829, %v840, %v842
        %v844 = vshll.u32 %v804, 8
        %v845 = vmul.u32.u64.compose %v844, %v843
        %v846 = vextract.low.u32 %v845
        %v847 = vextract.high.u32 %v845
        %v848 = vmul.u32.u64.compose %v844, %v839
        %v849 = vextract.low.u32 %v848
        %v850 = vextract.high.u32 %v848
        %v851 = vmul.u32 %v844, %v835
        %v852 = vadd.s32 %v847, %v849
        %vm853 = vc.u32 %v847, %v849
        %v854 = vadd.s32 %v850, 1
        %v855 = vsel %vm853, %v854, %v850
        %v856 = vadd.s32 %v851, %v855
        %v857 = vadd.s32 %v856, 536870912
        %v858 = vshrl.u32 %v857, 30
        %v859 = vshll.u32 %v858, 30
        %v860 = vsub.s32 %v856, %v859
        %vm861 = vcmp.lt.s32.totalorder %v860, 0
        %v862 = vsub.s32 0, %v860
        %v863 = vsel %vm861, %v862, %v860
        %v864 = vclz %v863
        %v865 = vsub.s32 %v864, 2
        %vm866 = vcmp.gt.s32.totalorder 0, %v865
        %v867 = vsel %vm866, 0, %v865
        %v868 = vsub.s32 32, %v867
        %v869 = vshll.u32 %v860, %v867
        %v870 = vshrl.u32 %v852, %v868
        %v871 = vor.u32 %v869, %v870
        %v872 = vsub.s32 4294967266, %v867
        %v873 = vadd.s32 %v872, 127
        %v874 = vshll.u32 %v873, 23
        %v875 = vor.u32 4788187, %v874
        %v876 = vand.u32 2147483647, %v875
        %v878 = vcvt.s32.f32 %v871
        %v879 = vmul.f32 %v878, %v876
        %v880 = vxor.u32 %v879, 2147483648
        %v881 = vsel %vm798, %v880, %v879
        %v882 = vsub.s32 4, %v858
        %v883 = vsel %vm798, %v882, %v858
        %v884 = vsel %vm797, %v265, %v881
        %v885 = vsel %vm797, 0, %v883
        %v886 = vcosq.f32.pop %v884
        %v887 = vsinq.f32.pop %v884
        %vm888 = vweird.f32 %v265
        %v889 = vadd.s32 %v885, 3
        %v890 = vand.u32 %v889, 3
        %vm891 = vcmp.lt.s32.totalorder %v890, 2
        %vm892 = vcmp.eq.s32.totalorder %v890, 0
        %v893 = vxor.u32 %v887, 2147483648
        %v894 = vsel %vm892, %v886, %v893
        %vm895 = vcmp.eq.s32.totalorder %v890, 2
        %v896 = vxor.u32 %v886, 2147483648
        %v897 = vsel %vm895, %v896, %v887
        %v898 = vsel %vm891, %v894, %v897
        %v899 = vsel %vm888, nan, %v898
        %v900 = vand.u32 2147483647, %v266
        %vm901 = vcmp.le.f32.partialorder %v900, 0.7853982
        %vm902 = vcmp.lt.s32.totalorder %v266, 0
        %v903 = vand.u32 %v266, 2139095040
        %v904 = vshrl.u32 %v903, 23
        %v905 = vsub.s32 %v904, 127
        %v906 = vand.u32 2147483647, %v266
        %v907 = vand.u32 %v906, 8388607
        %v908 = vor.u32 %v907, 8388608
        %v909 = vsub.s32 0, %v908
        %v910 = vadd.s32 %v905, 1
        %vm911 = vcmp.gt.s32.totalorder %v910, 0
        %v912 = vsel %vm911, %v910, 0
        %v913 = vshrl.u32 %v912, 5
        %v914 = vand.u32 %v912, 31
        %v915 = vsub.s32 32, %v914
        %v916 = vshrl.u32 683565275, %v915
        %v917 = vshll.u32 683565275, %v914
        %v918 = vshrl.u32 2475754826, %v915
        %v919 = vor.u32 %v917, %v918
        %v920 = vshll.u32 2475754826, %v914
        %v921 = vshrl.u32 2131351028, %v915
        %v922 = vor.u32 %v920, %v921
        %v923 = vshll.u32 2131351028, %v914
        %v924 = vshrl.u32 2102212464, %v915
        %v925 = vor.u32 %v923, %v924
        %v926 = vshll.u32 2102212464, %v914
        %v927 = vshrl.u32 920167782, %v915
        %v928 = vor.u32 %v926, %v927
        %v929 = vshll.u32 920167782, %v914
        %v930 = vshrl.u32 1326507024, %v915
        %v931 = vor.u32 %v929, %v930
        %vm932 = vcmp.lt.s32.totalorder %v913, 1
        %vm933 = vcmp.lt.s32.totalorder %v913, 2
        %vm934 = vcmp.lt.s32.totalorder %v913, 3
        %vm935 = vcmp.lt.s32.totalorder %v913, 4
        %v936 = vsel %vm932, %v916, %v919
        %v937 = vsel %vm935, %v925, 2102212464
        %v938 = vsel %vm934, %v922, %v937
        %v939 = vsel %vm933, %v936, %v938
        %v940 = vsel %vm932, %v919, %v922
        %v941 = vsel %vm935, %v928, 920167782
        %v942 = vsel %vm934, %v925, %v941
        %v943 = vsel %vm933, %v940, %v942
        %v944 = vsel %vm932, %v922, %v925
        %v945 = vsel %vm935, %v931, 1326507024
        %v946 = vsel %vm934, %v928, %v945
        %v947 = vsel %vm933, %v944, %v946
        %v948 = vshll.u32 %v908, 8
        %v949 = vmul.u32.u64.compose %v948, %v947
        %v950 = vextract.low.u32 %v949
        %v951 = vextract.high.u32 %v949
        %v952 = vmul.u32.u64.compose %v948, %v943
        %v953 = vextract.low.u32 %v952
        %v954 = vextract.high.u32 %v952
        %v955 = vmul.u32 %v948, %v939
        %v956 = vadd.s32 %v951, %v953
        %vm957 = vc.u32 %v951, %v953
        %v958 = vadd.s32 %v954, 1
        %v959 = vsel %vm957, %v958, %v954
        %v960 = vadd.s32 %v955, %v959
        %v961 = vadd.s32 %v960, 536870912
        %v962 = vshrl.u32 %v961, 30
        %v963 = vshll.u32 %v962, 30
        %v964 = vsub.s32 %v960, %v963
        %vm965 = vcmp.lt.s32.totalorder %v964, 0
        %v966 = vsub.s32 0, %v964
        %v967 = vsel %vm965, %v966, %v964
        %v968 = vclz %v967
        %v969 = vsub.s32 %v968, 2
        %vm970 = vcmp.gt.s32.totalorder 0, %v969
        %v971 = vsel %vm970, 0, %v969
        %v972 = vsub.s32 32, %v971
        %v973 = vshll.u32 %v964, %v971
        %v974 = vshrl.u32 %v956, %v972
        %v975 = vor.u32 %v973, %v974
        %v976 = vsub.s32 4294967266, %v971
        %v977 = vadd.s32 %v976, 127
        %v978 = vshll.u32 %v977, 23
        %v979 = vor.u32 4788187, %v978
        %v980 = vand.u32 2147483647, %v979
        %v982 = vcvt.s32.f32 %v975
        %v983 = vmul.f32 %v982, %v980
        %v984 = vxor.u32 %v983, 2147483648
        %v985 = vsel %vm902, %v984, %v983
        %v986 = vsub.s32 4, %v962
        %v987 = vsel %vm902, %v986, %v962
        %v988 = vsel %vm901, %v266, %v985
        %v989 = vsel %vm901, 0, %v987
        %v990 = vcosq.f32.pop %v988
        %v991 = vsinq.f32.pop %v988
        %vm992 = vweird.f32 %v266
        %v993 = vadd.s32 %v989, 3
        %v994 = vand.u32 %v993, 3
        %vm995 = vcmp.lt.s32.totalorder %v994, 2
        %vm996 = vcmp.eq.s32.totalorder %v994, 0
        %v997 = vxor.u32 %v991, 2147483648
        %v998 = vsel %vm996, %v990, %v997
        %vm999 = vcmp.eq.s32.totalorder %v994, 2
        %v1000 = vxor.u32 %v990, 2147483648
        %v1001 = vsel %vm999, %v1000, %v991
        %v1002 = vsel %vm995, %v998, %v1001
        %v1003 = vsel %vm992, nan, %v1002
        %v1004 = vand.u32 2147483647, %v267
        %vm1005 = vcmp.le.f32.partialorder %v1004, 0.7853982
        %vm1006 = vcmp.lt.s32.totalorder %v267, 0
        %v1007 = vand.u32 %v267, 2139095040
        %v1008 = vshrl.u32 %v1007, 23
        %v1009 = vsub.s32 %v1008, 127
        %v1010 = vand.u32 2147483647, %v267
        %v1011 = vand.u32 %v1010, 8388607
        %v1012 = vor.u32 %v1011, 8388608
        %v1013 = vsub.s32 0, %v1012
        %v1014 = vadd.s32 %v1009, 1
        %vm1015 = vcmp.gt.s32.totalorder %v1014, 0
        %v1016 = vsel %vm1015, %v1014, 0
        %v1017 = vshrl.u32 %v1016, 5
        %v1018 = vand.u32 %v1016, 31
        %v1019 = vsub.s32 32, %v1018
        %v1020 = vshrl.u32 683565275, %v1019
        %v1021 = vshll.u32 683565275, %v1018
        %v1022 = vshrl.u32 2475754826, %v1019
        %v1023 = vor.u32 %v1021, %v1022
        %v1024 = vshll.u32 2475754826, %v1018
        %v1025 = vshrl.u32 2131351028, %v1019
        %v1026 = vor.u32 %v1024, %v1025
        %v1027 = vshll.u32 2131351028, %v1018
        %v1028 = vshrl.u32 2102212464, %v1019
        %v1029 = vor.u32 %v1027, %v1028
        %v1030 = vshll.u32 2102212464, %v1018
        %v1031 = vshrl.u32 920167782, %v1019
        %v1032 = vor.u32 %v1030, %v1031
        %v1033 = vshll.u32 920167782, %v1018
        %v1034 = vshrl.u32 1326507024, %v1019
        %v1035 = vor.u32 %v1033, %v1034
        %vm1036 = vcmp.lt.s32.totalorder %v1017, 1
        %vm1037 = vcmp.lt.s32.totalorder %v1017, 2
        %vm1038 = vcmp.lt.s32.totalorder %v1017, 3
        %vm1039 = vcmp.lt.s32.totalorder %v1017, 4
        %v1040 = vsel %vm1036, %v1020, %v1023
        %v1041 = vsel %vm1039, %v1029, 2102212464
        %v1042 = vsel %vm1038, %v1026, %v1041
        %v1043 = vsel %vm1037, %v1040, %v1042
        %v1044 = vsel %vm1036, %v1023, %v1026
        %v1045 = vsel %vm1039, %v1032, 920167782
        %v1046 = vsel %vm1038, %v1029, %v1045
        %v1047 = vsel %vm1037, %v1044, %v1046
        %v1048 = vsel %vm1036, %v1026, %v1029
        %v1049 = vsel %vm1039, %v1035, 1326507024
        %v1050 = vsel %vm1038, %v1032, %v1049
        %v1051 = vsel %vm1037, %v1048, %v1050
        %v1052 = vshll.u32 %v1012, 8
        %v1053 = vmul.u32.u64.compose %v1052, %v1051
        %v1054 = vextract.low.u32 %v1053
        %v1055 = vextract.high.u32 %v1053
        %v1056 = vmul.u32.u64.compose %v1052, %v1047
        %v1057 = vextract.low.u32 %v1056
        %v1058 = vextract.high.u32 %v1056
        %v1059 = vmul.u32 %v1052, %v1043
        %v1060 = vadd.s32 %v1055, %v1057
        %vm1061 = vc.u32 %v1055, %v1057
        %v1062 = vadd.s32 %v1058, 1
        %v1063 = vsel %vm1061, %v1062, %v1058
        %v1064 = vadd.s32 %v1059, %v1063
        %v1065 = vadd.s32 %v1064, 536870912
        %v1066 = vshrl.u32 %v1065, 30
        %v1067 = vshll.u32 %v1066, 30
        %v1068 = vsub.s32 %v1064, %v1067
        %vm1069 = vcmp.lt.s32.totalorder %v1068, 0
        %v1070 = vsub.s32 0, %v1068
        %v1071 = vsel %vm1069, %v1070, %v1068
        %v1072 = vclz %v1071
        %v1073 = vsub.s32 %v1072, 2
        %vm1074 = vcmp.gt.s32.totalorder 0, %v1073
        %v1075 = vsel %vm1074, 0, %v1073
        %v1076 = vsub.s32 32, %v1075
        %v1077 = vshll.u32 %v1068, %v1075
        %v1078 = vshrl.u32 %v1060, %v1076
        %v1079 = vor.u32 %v1077, %v1078
        %v1080 = vsub.s32 4294967266, %v1075
        %v1081 = vadd.s32 %v1080, 127
        %v1082 = vshll.u32 %v1081, 23
        %v1083 = vor.u32 4788187, %v1082
        %v1084 = vand.u32 2147483647, %v1083
        %v1086 = vcvt.s32.f32 %v1079
        %v1087 = vmul.f32 %v1086, %v1084
        %v1088 = vxor.u32 %v1087, 2147483648
        %v1089 = vsel %vm1006, %v1088, %v1087
        %v1090 = vsub.s32 4, %v1066
        %v1091 = vsel %vm1006, %v1090, %v1066
        %v1092 = vsel %vm1005, %v267, %v1089
        %v1093 = vsel %vm1005, 0, %v1091
        %v1094 = vcosq.f32.pop %v1092
        %v1095 = vsinq.f32.pop %v1092
        %vm1096 = vweird.f32 %v267
        %v1097 = vadd.s32 %v1093, 3
        %v1098 = vand.u32 %v1097, 3
        %vm1099 = vcmp.lt.s32.totalorder %v1098, 2
        %vm1100 = vcmp.eq.s32.totalorder %v1098, 0
        %v1101 = vxor.u32 %v1095, 2147483648
        %v1102 = vsel %vm1100, %v1094, %v1101
        %vm1103 = vcmp.eq.s32.totalorder %v1098, 2
        %v1104 = vxor.u32 %v1094, 2147483648
        %v1105 = vsel %vm1103, %v1104, %v1095
        %v1106 = vsel %vm1099, %v1102, %v1105
        %v1107 = vsel %vm1096, nan, %v1106
        %v1108 = vand.u32 2147483647, %v268
        %vm1109 = vcmp.le.f32.partialorder %v1108, 0.7853982
        %vm1110 = vcmp.lt.s32.totalorder %v268, 0
        %v1111 = vand.u32 %v268, 2139095040
        %v1112 = vshrl.u32 %v1111, 23
        %v1113 = vsub.s32 %v1112, 127
        %v1114 = vand.u32 2147483647, %v268
        %v1115 = vand.u32 %v1114, 8388607
        %v1116 = vor.u32 %v1115, 8388608
        %v1117 = vsub.s32 0, %v1116
        %v1118 = vadd.s32 %v1113, 1
        %vm1119 = vcmp.gt.s32.totalorder %v1118, 0
        %v1120 = vsel %vm1119, %v1118, 0
        %v1121 = vshrl.u32 %v1120, 5
        %v1122 = vand.u32 %v1120, 31
        %v1123 = vsub.s32 32, %v1122
        %v1124 = vshrl.u32 683565275, %v1123
        %v1125 = vshll.u32 683565275, %v1122
        %v1126 = vshrl.u32 2475754826, %v1123
        %v1127 = vor.u32 %v1125, %v1126
        %v1128 = vshll.u32 2475754826, %v1122
        %v1129 = vshrl.u32 2131351028, %v1123
        %v1130 = vor.u32 %v1128, %v1129
        %v1131 = vshll.u32 2131351028, %v1122
        %v1132 = vshrl.u32 2102212464, %v1123
        %v1133 = vor.u32 %v1131, %v1132
        %v1134 = vshll.u32 2102212464, %v1122
        %v1135 = vshrl.u32 920167782, %v1123
        %v1136 = vor.u32 %v1134, %v1135
        %v1137 = vshll.u32 920167782, %v1122
        %v1138 = vshrl.u32 1326507024, %v1123
        %v1139 = vor.u32 %v1137, %v1138
        %vm1140 = vcmp.lt.s32.totalorder %v1121, 1
        %vm1141 = vcmp.lt.s32.totalorder %v1121, 2
        %vm1142 = vcmp.lt.s32.totalorder %v1121, 3
        %vm1143 = vcmp.lt.s32.totalorder %v1121, 4
        %v1144 = vsel %vm1140, %v1124, %v1127
        %v1145 = vsel %vm1143, %v1133, 2102212464
        %v1146 = vsel %vm1142, %v1130, %v1145
        %v1147 = vsel %vm1141, %v1144, %v1146
        %v1148 = vsel %vm1140, %v1127, %v1130
        %v1149 = vsel %vm1143, %v1136, 920167782
        %v1150 = vsel %vm1142, %v1133, %v1149
        %v1151 = vsel %vm1141, %v1148, %v1150
        %v1152 = vsel %vm1140, %v1130, %v1133
        %v1153 = vsel %vm1143, %v1139, 1326507024
        %v1154 = vsel %vm1142, %v1136, %v1153
        %v1155 = vsel %vm1141, %v1152, %v1154
        %v1156 = vshll.u32 %v1116, 8
        %v1157 = vmul.u32.u64.compose %v1156, %v1155
        %v1158 = vextract.low.u32 %v1157
        %v1159 = vextract.high.u32 %v1157
        %v1160 = vmul.u32.u64.compose %v1156, %v1151
        %v1161 = vextract.low.u32 %v1160
        %v1162 = vextract.high.u32 %v1160
        %v1163 = vmul.u32 %v1156, %v1147
        %v1164 = vadd.s32 %v1159, %v1161
        %vm1165 = vc.u32 %v1159, %v1161
        %v1166 = vadd.s32 %v1162, 1
        %v1167 = vsel %vm1165, %v1166, %v1162
        %v1168 = vadd.s32 %v1163, %v1167
        %v1169 = vadd.s32 %v1168, 536870912
        %v1170 = vshrl.u32 %v1169, 30
        %v1171 = vshll.u32 %v1170, 30
        %v1172 = vsub.s32 %v1168, %v1171
        %vm1173 = vcmp.lt.s32.totalorder %v1172, 0
        %v1174 = vsub.s32 0, %v1172
        %v1175 = vsel %vm1173, %v1174, %v1172
        %v1176 = vclz %v1175
        %v1177 = vsub.s32 %v1176, 2
        %vm1178 = vcmp.gt.s32.totalorder 0, %v1177
        %v1179 = vsel %vm1178, 0, %v1177
        %v1180 = vsub.s32 32, %v1179
        %v1181 = vshll.u32 %v1172, %v1179
        %v1182 = vshrl.u32 %v1164, %v1180
        %v1183 = vor.u32 %v1181, %v1182
        %v1184 = vsub.s32 4294967266, %v1179
        %v1185 = vadd.s32 %v1184, 127
        %v1186 = vshll.u32 %v1185, 23
        %v1187 = vor.u32 4788187, %v1186
        %v1188 = vand.u32 2147483647, %v1187
        %v1190 = vcvt.s32.f32 %v1183
        %v1191 = vmul.f32 %v1190, %v1188
        %v1192 = vxor.u32 %v1191, 2147483648
        %v1193 = vsel %vm1110, %v1192, %v1191
        %v1194 = vsub.s32 4, %v1170
        %v1195 = vsel %vm1110, %v1194, %v1170
        %v1196 = vsel %vm1109, %v268, %v1193
        %v1197 = vsel %vm1109, 0, %v1195
        %v1198 = vcosq.f32.pop %v1196
        %v1199 = vsinq.f32.pop %v1196
        %vm1200 = vweird.f32 %v268
        %v1201 = vadd.s32 %v1197, 3
        %v1202 = vand.u32 %v1201, 3
        %vm1203 = vcmp.lt.s32.totalorder %v1202, 2
        %vm1204 = vcmp.eq.s32.totalorder %v1202, 0
        %v1205 = vxor.u32 %v1199, 2147483648
        %v1206 = vsel %vm1204, %v1198, %v1205
        %vm1207 = vcmp.eq.s32.totalorder %v1202, 2
        %v1208 = vxor.u32 %v1198, 2147483648
        %v1209 = vsel %vm1207, %v1208, %v1199
        %v1210 = vsel %vm1203, %v1206, %v1209
        %v1211 = vsel %vm1200, nan, %v1210
        %v1212 = vand.u32 2147483647, %v269
        %vm1213 = vcmp.le.f32.partialorder %v1212, 0.7853982
        %vm1214 = vcmp.lt.s32.totalorder %v269, 0
        %v1215 = vand.u32 %v269, 2139095040
        %v1216 = vshrl.u32 %v1215, 23
        %v1217 = vsub.s32 %v1216, 127
        %v1218 = vand.u32 2147483647, %v269
        %v1219 = vand.u32 %v1218, 8388607
        %v1220 = vor.u32 %v1219, 8388608
        %v1221 = vsub.s32 0, %v1220
        %v1222 = vadd.s32 %v1217, 1
        %vm1223 = vcmp.gt.s32.totalorder %v1222, 0
        %v1224 = vsel %vm1223, %v1222, 0
        %v1225 = vshrl.u32 %v1224, 5
        %v1226 = vand.u32 %v1224, 31
        %v1227 = vsub.s32 32, %v1226
        %v1228 = vshrl.u32 683565275, %v1227
        %v1229 = vshll.u32 683565275, %v1226
        %v1230 = vshrl.u32 2475754826, %v1227
        %v1231 = vor.u32 %v1229, %v1230
        %v1232 = vshll.u32 2475754826, %v1226
        %v1233 = vshrl.u32 2131351028, %v1227
        %v1234 = vor.u32 %v1232, %v1233
        %v1235 = vshll.u32 2131351028, %v1226
        %v1236 = vshrl.u32 2102212464, %v1227
        %v1237 = vor.u32 %v1235, %v1236
        %v1238 = vshll.u32 2102212464, %v1226
        %v1239 = vshrl.u32 920167782, %v1227
        %v1240 = vor.u32 %v1238, %v1239
        %v1241 = vshll.u32 920167782, %v1226
        %v1242 = vshrl.u32 1326507024, %v1227
        %v1243 = vor.u32 %v1241, %v1242
        %vm1244 = vcmp.lt.s32.totalorder %v1225, 1
        %vm1245 = vcmp.lt.s32.totalorder %v1225, 2
        %vm1246 = vcmp.lt.s32.totalorder %v1225, 3
        %vm1247 = vcmp.lt.s32.totalorder %v1225, 4
        %v1248 = vsel %vm1244, %v1228, %v1231
        %v1249 = vsel %vm1247, %v1237, 2102212464
        %v1250 = vsel %vm1246, %v1234, %v1249
        %v1251 = vsel %vm1245, %v1248, %v1250
        %v1252 = vsel %vm1244, %v1231, %v1234
        %v1253 = vsel %vm1247, %v1240, 920167782
        %v1254 = vsel %vm1246, %v1237, %v1253
        %v1255 = vsel %vm1245, %v1252, %v1254
        %v1256 = vsel %vm1244, %v1234, %v1237
        %v1257 = vsel %vm1247, %v1243, 1326507024
        %v1258 = vsel %vm1246, %v1240, %v1257
        %v1259 = vsel %vm1245, %v1256, %v1258
        %v1260 = vshll.u32 %v1220, 8
        %v1261 = vmul.u32.u64.compose %v1260, %v1259
        %v1262 = vextract.low.u32 %v1261
        %v1263 = vextract.high.u32 %v1261
        %v1264 = vmul.u32.u64.compose %v1260, %v1255
        %v1265 = vextract.low.u32 %v1264
        %v1266 = vextract.high.u32 %v1264
        %v1267 = vmul.u32 %v1260, %v1251
        %v1268 = vadd.s32 %v1263, %v1265
        %vm1269 = vc.u32 %v1263, %v1265
        %v1270 = vadd.s32 %v1266, 1
        %v1271 = vsel %vm1269, %v1270, %v1266
        %v1272 = vadd.s32 %v1267, %v1271
        %v1273 = vadd.s32 %v1272, 536870912
        %v1274 = vshrl.u32 %v1273, 30
        %v1275 = vshll.u32 %v1274, 30
        %v1276 = vsub.s32 %v1272, %v1275
        %vm1277 = vcmp.lt.s32.totalorder %v1276, 0
        %v1278 = vsub.s32 0, %v1276
        %v1279 = vsel %vm1277, %v1278, %v1276
        %v1280 = vclz %v1279
        %v1281 = vsub.s32 %v1280, 2
        %vm1282 = vcmp.gt.s32.totalorder 0, %v1281
        %v1283 = vsel %vm1282, 0, %v1281
        %v1284 = vsub.s32 32, %v1283
        %v1285 = vshll.u32 %v1276, %v1283
        %v1286 = vshrl.u32 %v1268, %v1284
        %v1287 = vor.u32 %v1285, %v1286
        %v1288 = vsub.s32 4294967266, %v1283
        %v1289 = vadd.s32 %v1288, 127
        %v1290 = vshll.u32 %v1289, 23
        %v1291 = vor.u32 4788187, %v1290
        %v1292 = vand.u32 2147483647, %v1291
        %v1294 = vcvt.s32.f32 %v1287
        %v1295 = vmul.f32 %v1294, %v1292
        %v1296 = vxor.u32 %v1295, 2147483648
        %v1297 = vsel %vm1214, %v1296, %v1295
        %v1298 = vsub.s32 4, %v1274
        %v1299 = vsel %vm1214, %v1298, %v1274
        %v1300 = vsel %vm1213, %v269, %v1297
        %v1301 = vsel %vm1213, 0, %v1299
        %v1302 = vcosq.f32.pop %v1300
        %v1303 = vsinq.f32.pop %v1300
        %vm1304 = vweird.f32 %v269
        %v1305 = vadd.s32 %v1301, 3
        %v1306 = vand.u32 %v1305, 3
        %vm1307 = vcmp.lt.s32.totalorder %v1306, 2
        %vm1308 = vcmp.eq.s32.totalorder %v1306, 0
        %v1309 = vxor.u32 %v1303, 2147483648
        %v1310 = vsel %vm1308, %v1302, %v1309
        %vm1311 = vcmp.eq.s32.totalorder %v1306, 2
        %v1312 = vxor.u32 %v1302, 2147483648
        %v1313 = vsel %vm1311, %v1312, %v1303
        %v1314 = vsel %vm1307, %v1310, %v1313
        %v1315 = vsel %vm1304, nan, %v1314
        %v1316 = vand.u32 2147483647, %v270
        %vm1317 = vcmp.le.f32.partialorder %v1316, 0.7853982
        %vm1318 = vcmp.lt.s32.totalorder %v270, 0
        %v1319 = vand.u32 %v270, 2139095040
        %v1320 = vshrl.u32 %v1319, 23
        %v1321 = vsub.s32 %v1320, 127
        %v1322 = vand.u32 2147483647, %v270
        %v1323 = vand.u32 %v1322, 8388607
        %v1324 = vor.u32 %v1323, 8388608
        %v1325 = vsub.s32 0, %v1324
        %v1326 = vadd.s32 %v1321, 1
        %vm1327 = vcmp.gt.s32.totalorder %v1326, 0
        %v1328 = vsel %vm1327, %v1326, 0
        %v1329 = vshrl.u32 %v1328, 5
        %v1330 = vand.u32 %v1328, 31
        %v1331 = vsub.s32 32, %v1330
        %v1332 = vshrl.u32 683565275, %v1331
        %v1333 = vshll.u32 683565275, %v1330
        %v1334 = vshrl.u32 2475754826, %v1331
        %v1335 = vor.u32 %v1333, %v1334
        %v1336 = vshll.u32 2475754826, %v1330
        %v1337 = vshrl.u32 2131351028, %v1331
        %v1338 = vor.u32 %v1336, %v1337
        %v1339 = vshll.u32 2131351028, %v1330
        %v1340 = vshrl.u32 2102212464, %v1331
        %v1341 = vor.u32 %v1339, %v1340
        %v1342 = vshll.u32 2102212464, %v1330
        %v1343 = vshrl.u32 920167782, %v1331
        %v1344 = vor.u32 %v1342, %v1343
        %v1345 = vshll.u32 920167782, %v1330
        %v1346 = vshrl.u32 1326507024, %v1331
        %v1347 = vor.u32 %v1345, %v1346
        %vm1348 = vcmp.lt.s32.totalorder %v1329, 1
        %vm1349 = vcmp.lt.s32.totalorder %v1329, 2
        %vm1350 = vcmp.lt.s32.totalorder %v1329, 3
        %vm1351 = vcmp.lt.s32.totalorder %v1329, 4
        %v1352 = vsel %vm1348, %v1332, %v1335
        %v1353 = vsel %vm1351, %v1341, 2102212464
        %v1354 = vsel %vm1350, %v1338, %v1353
        %v1355 = vsel %vm1349, %v1352, %v1354
        %v1356 = vsel %vm1348, %v1335, %v1338
        %v1357 = vsel %vm1351, %v1344, 920167782
        %v1358 = vsel %vm1350, %v1341, %v1357
        %v1359 = vsel %vm1349, %v1356, %v1358
        %v1360 = vsel %vm1348, %v1338, %v1341
        %v1361 = vsel %vm1351, %v1347, 1326507024
        %v1362 = vsel %vm1350, %v1344, %v1361
        %v1363 = vsel %vm1349, %v1360, %v1362
        %v1364 = vshll.u32 %v1324, 8
        %v1365 = vmul.u32.u64.compose %v1364, %v1363
        %v1366 = vextract.low.u32 %v1365
        %v1367 = vextract.high.u32 %v1365
        %v1368 = vmul.u32.u64.compose %v1364, %v1359
        %v1369 = vextract.low.u32 %v1368
        %v1370 = vextract.high.u32 %v1368
        %v1371 = vmul.u32 %v1364, %v1355
        %v1372 = vadd.s32 %v1367, %v1369
        %vm1373 = vc.u32 %v1367, %v1369
        %v1374 = vadd.s32 %v1370, 1
        %v1375 = vsel %vm1373, %v1374, %v1370
        %v1376 = vadd.s32 %v1371, %v1375
        %v1377 = vadd.s32 %v1376, 536870912
        %v1378 = vshrl.u32 %v1377, 30
        %v1379 = vshll.u32 %v1378, 30
        %v1380 = vsub.s32 %v1376, %v1379
        %vm1381 = vcmp.lt.s32.totalorder %v1380, 0
        %v1382 = vsub.s32 0, %v1380
        %v1383 = vsel %vm1381, %v1382, %v1380
        %v1384 = vclz %v1383
        %v1385 = vsub.s32 %v1384, 2
        %vm1386 = vcmp.gt.s32.totalorder 0, %v1385
        %v1387 = vsel %vm1386, 0, %v1385
        %v1388 = vsub.s32 32, %v1387
        %v1389 = vshll.u32 %v1380, %v1387
        %v1390 = vshrl.u32 %v1372, %v1388
        %v1391 = vor.u32 %v1389, %v1390
        %v1392 = vsub.s32 4294967266, %v1387
        %v1393 = vadd.s32 %v1392, 127
        %v1394 = vshll.u32 %v1393, 23
        %v1395 = vor.u32 4788187, %v1394
        %v1396 = vand.u32 2147483647, %v1395
        %v1398 = vcvt.s32.f32 %v1391
        %v1399 = vmul.f32 %v1398, %v1396
        %v1400 = vxor.u32 %v1399, 2147483648
        %v1401 = vsel %vm1318, %v1400, %v1399
        %v1402 = vsub.s32 4, %v1378
        %v1403 = vsel %vm1318, %v1402, %v1378
        %v1404 = vsel %vm1317, %v270, %v1401
        %v1405 = vsel %vm1317, 0, %v1403
        %v1406 = vcosq.f32.pop %v1404
        %v1407 = vsinq.f32.pop %v1404
        %vm1408 = vweird.f32 %v270
        %v1409 = vadd.s32 %v1405, 3
        %v1410 = vand.u32 %v1409, 3
        %vm1411 = vcmp.lt.s32.totalorder %v1410, 2
        %vm1412 = vcmp.eq.s32.totalorder %v1410, 0
        %v1413 = vxor.u32 %v1407, 2147483648
        %v1414 = vsel %vm1412, %v1406, %v1413
        %vm1415 = vcmp.eq.s32.totalorder %v1410, 2
        %v1416 = vxor.u32 %v1406, 2147483648
        %v1417 = vsel %vm1415, %v1416, %v1407
        %v1418 = vsel %vm1411, %v1414, %v1417
        %v1419 = vsel %vm1408, nan, %v1418
        %v1420 = vand.u32 2147483647, %v271
        %vm1421 = vcmp.le.f32.partialorder %v1420, 0.7853982
        %vm1422 = vcmp.lt.s32.totalorder %v271, 0
        %v1423 = vand.u32 %v271, 2139095040
        %v1424 = vshrl.u32 %v1423, 23
        %v1425 = vsub.s32 %v1424, 127
        %v1426 = vand.u32 2147483647, %v271
        %v1427 = vand.u32 %v1426, 8388607
        %v1428 = vor.u32 %v1427, 8388608
        %v1429 = vsub.s32 0, %v1428
        %v1430 = vadd.s32 %v1425, 1
        %vm1431 = vcmp.gt.s32.totalorder %v1430, 0
        %v1432 = vsel %vm1431, %v1430, 0
        %v1433 = vshrl.u32 %v1432, 5
        %v1434 = vand.u32 %v1432, 31
        %v1435 = vsub.s32 32, %v1434
        %v1436 = vshrl.u32 683565275, %v1435
        %v1437 = vshll.u32 683565275, %v1434
        %v1438 = vshrl.u32 2475754826, %v1435
        %v1439 = vor.u32 %v1437, %v1438
        %v1440 = vshll.u32 2475754826, %v1434
        %v1441 = vshrl.u32 2131351028, %v1435
        %v1442 = vor.u32 %v1440, %v1441
        %v1443 = vshll.u32 2131351028, %v1434
        %v1444 = vshrl.u32 2102212464, %v1435
        %v1445 = vor.u32 %v1443, %v1444
        %v1446 = vshll.u32 2102212464, %v1434
        %v1447 = vshrl.u32 920167782, %v1435
        %v1448 = vor.u32 %v1446, %v1447
        %v1449 = vshll.u32 920167782, %v1434
        %v1450 = vshrl.u32 1326507024, %v1435
        %v1451 = vor.u32 %v1449, %v1450
        %vm1452 = vcmp.lt.s32.totalorder %v1433, 1
        %vm1453 = vcmp.lt.s32.totalorder %v1433, 2
        %vm1454 = vcmp.lt.s32.totalorder %v1433, 3
        %vm1455 = vcmp.lt.s32.totalorder %v1433, 4
        %v1456 = vsel %vm1452, %v1436, %v1439
        %v1457 = vsel %vm1455, %v1445, 2102212464
        %v1458 = vsel %vm1454, %v1442, %v1457
        %v1459 = vsel %vm1453, %v1456, %v1458
        %v1460 = vsel %vm1452, %v1439, %v1442
        %v1461 = vsel %vm1455, %v1448, 920167782
        %v1462 = vsel %vm1454, %v1445, %v1461
        %v1463 = vsel %vm1453, %v1460, %v1462
        %v1464 = vsel %vm1452, %v1442, %v1445
        %v1465 = vsel %vm1455, %v1451, 1326507024
        %v1466 = vsel %vm1454, %v1448, %v1465
        %v1467 = vsel %vm1453, %v1464, %v1466
        %v1468 = vshll.u32 %v1428, 8
        %v1469 = vmul.u32.u64.compose %v1468, %v1467
        %v1470 = vextract.low.u32 %v1469
        %v1471 = vextract.high.u32 %v1469
        %v1472 = vmul.u32.u64.compose %v1468, %v1463
        %v1473 = vextract.low.u32 %v1472
        %v1474 = vextract.high.u32 %v1472
        %v1475 = vmul.u32 %v1468, %v1459
        %v1476 = vadd.s32 %v1471, %v1473
        %vm1477 = vc.u32 %v1471, %v1473
        %v1478 = vadd.s32 %v1474, 1
        %v1479 = vsel %vm1477, %v1478, %v1474
        %v1480 = vadd.s32 %v1475, %v1479
        %v1481 = vadd.s32 %v1480, 536870912
        %v1482 = vshrl.u32 %v1481, 30
        %v1483 = vshll.u32 %v1482, 30
        %v1484 = vsub.s32 %v1480, %v1483
        %vm1485 = vcmp.lt.s32.totalorder %v1484, 0
        %v1486 = vsub.s32 0, %v1484
        %v1487 = vsel %vm1485, %v1486, %v1484
        %v1488 = vclz %v1487
        %v1489 = vsub.s32 %v1488, 2
        %vm1490 = vcmp.gt.s32.totalorder 0, %v1489
        %v1491 = vsel %vm1490, 0, %v1489
        %v1492 = vsub.s32 32, %v1491
        %v1493 = vshll.u32 %v1484, %v1491
        %v1494 = vshrl.u32 %v1476, %v1492
        %v1495 = vor.u32 %v1493, %v1494
        %v1496 = vsub.s32 4294967266, %v1491
        %v1497 = vadd.s32 %v1496, 127
        %v1498 = vshll.u32 %v1497, 23
        %v1499 = vor.u32 4788187, %v1498
        %v1500 = vand.u32 2147483647, %v1499
        %v1502 = vcvt.s32.f32 %v1495
        %v1503 = vmul.f32 %v1502, %v1500
        %v1504 = vxor.u32 %v1503, 2147483648
        %v1505 = vsel %vm1422, %v1504, %v1503
        %v1506 = vsub.s32 4, %v1482
        %v1507 = vsel %vm1422, %v1506, %v1482
        %v1508 = vsel %vm1421, %v271, %v1505
        %v1509 = vsel %vm1421, 0, %v1507
        %v1510 = vcosq.f32.pop %v1508
        %v1511 = vsinq.f32.pop %v1508
        %vm1512 = vweird.f32 %v271
        %v1513 = vadd.s32 %v1509, 3
        %v1514 = vand.u32 %v1513, 3
        %vm1515 = vcmp.lt.s32.totalorder %v1514, 2
        %vm1516 = vcmp.eq.s32.totalorder %v1514, 0
        %v1517 = vxor.u32 %v1511, 2147483648
        %v1518 = vsel %vm1516, %v1510, %v1517
        %vm1519 = vcmp.eq.s32.totalorder %v1514, 2
        %v1520 = vxor.u32 %v1510, 2147483648
        %v1521 = vsel %vm1519, %v1520, %v1511
        %v1522 = vsel %vm1515, %v1518, %v1521
        %v1523 = vsel %vm1512, nan, %v1522
        %v1524 = vand.u32 2147483647, %v272
        %vm1525 = vcmp.le.f32.partialorder %v1524, 0.7853982
        %vm1526 = vcmp.lt.s32.totalorder %v272, 0
        %v1527 = vand.u32 %v272, 2139095040
        %v1528 = vshrl.u32 %v1527, 23
        %v1529 = vsub.s32 %v1528, 127
        %v1530 = vand.u32 2147483647, %v272
        %v1531 = vand.u32 %v1530, 8388607
        %v1532 = vor.u32 %v1531, 8388608
        %v1533 = vsub.s32 0, %v1532
        %v1534 = vadd.s32 %v1529, 1
        %vm1535 = vcmp.gt.s32.totalorder %v1534, 0
        %v1536 = vsel %vm1535, %v1534, 0
        %v1537 = vshrl.u32 %v1536, 5
        %v1538 = vand.u32 %v1536, 31
        %v1539 = vsub.s32 32, %v1538
        %v1540 = vshrl.u32 683565275, %v1539
        %v1541 = vshll.u32 683565275, %v1538
        %v1542 = vshrl.u32 2475754826, %v1539
        %v1543 = vor.u32 %v1541, %v1542
        %v1544 = vshll.u32 2475754826, %v1538
        %v1545 = vshrl.u32 2131351028, %v1539
        %v1546 = vor.u32 %v1544, %v1545
        %v1547 = vshll.u32 2131351028, %v1538
        %v1548 = vshrl.u32 2102212464, %v1539
        %v1549 = vor.u32 %v1547, %v1548
        %v1550 = vshll.u32 2102212464, %v1538
        %v1551 = vshrl.u32 920167782, %v1539
        %v1552 = vor.u32 %v1550, %v1551
        %v1553 = vshll.u32 920167782, %v1538
        %v1554 = vshrl.u32 1326507024, %v1539
        %v1555 = vor.u32 %v1553, %v1554
        %vm1556 = vcmp.lt.s32.totalorder %v1537, 1
        %vm1557 = vcmp.lt.s32.totalorder %v1537, 2
        %vm1558 = vcmp.lt.s32.totalorder %v1537, 3
        %vm1559 = vcmp.lt.s32.totalorder %v1537, 4
        %v1560 = vsel %vm1556, %v1540, %v1543
        %v1561 = vsel %vm1559, %v1549, 2102212464
        %v1562 = vsel %vm1558, %v1546, %v1561
        %v1563 = vsel %vm1557, %v1560, %v1562
        %v1564 = vsel %vm1556, %v1543, %v1546
        %v1565 = vsel %vm1559, %v1552, 920167782
        %v1566 = vsel %vm1558, %v1549, %v1565
        %v1567 = vsel %vm1557, %v1564, %v1566
        %v1568 = vsel %vm1556, %v1546, %v1549
        %v1569 = vsel %vm1559, %v1555, 1326507024
        %v1570 = vsel %vm1558, %v1552, %v1569
        %v1571 = vsel %vm1557, %v1568, %v1570
        %v1572 = vshll.u32 %v1532, 8
        %v1573 = vmul.u32.u64.compose %v1572, %v1571
        %v1574 = vextract.low.u32 %v1573
        %v1575 = vextract.high.u32 %v1573
        %v1576 = vmul.u32.u64.compose %v1572, %v1567
        %v1577 = vextract.low.u32 %v1576
        %v1578 = vextract.high.u32 %v1576
        %v1579 = vmul.u32 %v1572, %v1563
        %v1580 = vadd.s32 %v1575, %v1577
        %vm1581 = vc.u32 %v1575, %v1577
        %v1582 = vadd.s32 %v1578, 1
        %v1583 = vsel %vm1581, %v1582, %v1578
        %v1584 = vadd.s32 %v1579, %v1583
        %v1585 = vadd.s32 %v1584, 536870912
        %v1586 = vshrl.u32 %v1585, 30
        %v1587 = vshll.u32 %v1586, 30
        %v1588 = vsub.s32 %v1584, %v1587
        %vm1589 = vcmp.lt.s32.totalorder %v1588, 0
        %v1590 = vsub.s32 0, %v1588
        %v1591 = vsel %vm1589, %v1590, %v1588
        %v1592 = vclz %v1591
        %v1593 = vsub.s32 %v1592, 2
        %vm1594 = vcmp.gt.s32.totalorder 0, %v1593
        %v1595 = vsel %vm1594, 0, %v1593
        %v1596 = vsub.s32 32, %v1595
        %v1597 = vshll.u32 %v1588, %v1595
        %v1598 = vshrl.u32 %v1580, %v1596
        %v1599 = vor.u32 %v1597, %v1598
        %v1600 = vsub.s32 4294967266, %v1595
        %v1601 = vadd.s32 %v1600, 127
        %v1602 = vshll.u32 %v1601, 23
        %v1603 = vor.u32 4788187, %v1602
        %v1604 = vand.u32 2147483647, %v1603
        %v1606 = vcvt.s32.f32 %v1599
        %v1607 = vmul.f32 %v1606, %v1604
        %v1608 = vxor.u32 %v1607, 2147483648
        %v1609 = vsel %vm1526, %v1608, %v1607
        %v1610 = vsub.s32 4, %v1586
        %v1611 = vsel %vm1526, %v1610, %v1586
        %v1612 = vsel %vm1525, %v272, %v1609
        %v1613 = vsel %vm1525, 0, %v1611
        %v1614 = vcosq.f32.pop %v1612
        %v1615 = vsinq.f32.pop %v1612
        %vm1616 = vweird.f32 %v272
        %v1617 = vadd.s32 %v1613, 3
        %v1618 = vand.u32 %v1617, 3
        %vm1619 = vcmp.lt.s32.totalorder %v1618, 2
        %vm1620 = vcmp.eq.s32.totalorder %v1618, 0
        %v1621 = vxor.u32 %v1615, 2147483648
        %v1622 = vsel %vm1620, %v1614, %v1621
        %vm1623 = vcmp.eq.s32.totalorder %v1618, 2
        %v1624 = vxor.u32 %v1614, 2147483648
        %v1625 = vsel %vm1623, %v1624, %v1615
        %v1626 = vsel %vm1619, %v1622, %v1625
        %v1627 = vsel %vm1616, nan, %v1626
        %v1628 = vand.u32 2147483647, %v273
        %vm1629 = vcmp.le.f32.partialorder %v1628, 0.7853982
        %vm1630 = vcmp.lt.s32.totalorder %v273, 0
        %v1631 = vand.u32 %v273, 2139095040
        %v1632 = vshrl.u32 %v1631, 23
        %v1633 = vsub.s32 %v1632, 127
        %v1634 = vand.u32 2147483647, %v273
        %v1635 = vand.u32 %v1634, 8388607
        %v1636 = vor.u32 %v1635, 8388608
        %v1637 = vsub.s32 0, %v1636
        %v1638 = vadd.s32 %v1633, 1
        %vm1639 = vcmp.gt.s32.totalorder %v1638, 0
        %v1640 = vsel %vm1639, %v1638, 0
        %v1641 = vshrl.u32 %v1640, 5
        %v1642 = vand.u32 %v1640, 31
        %v1643 = vsub.s32 32, %v1642
        %v1644 = vshrl.u32 683565275, %v1643
        %v1645 = vshll.u32 683565275, %v1642
        %v1646 = vshrl.u32 2475754826, %v1643
        %v1647 = vor.u32 %v1645, %v1646
        %v1648 = vshll.u32 2475754826, %v1642
        %v1649 = vshrl.u32 2131351028, %v1643
        %v1650 = vor.u32 %v1648, %v1649
        %v1651 = vshll.u32 2131351028, %v1642
        %v1652 = vshrl.u32 2102212464, %v1643
        %v1653 = vor.u32 %v1651, %v1652
        %v1654 = vshll.u32 2102212464, %v1642
        %v1655 = vshrl.u32 920167782, %v1643
        %v1656 = vor.u32 %v1654, %v1655
        %v1657 = vshll.u32 920167782, %v1642
        %v1658 = vshrl.u32 1326507024, %v1643
        %v1659 = vor.u32 %v1657, %v1658
        %vm1660 = vcmp.lt.s32.totalorder %v1641, 1
        %vm1661 = vcmp.lt.s32.totalorder %v1641, 2
        %vm1662 = vcmp.lt.s32.totalorder %v1641, 3
        %vm1663 = vcmp.lt.s32.totalorder %v1641, 4
        %v1664 = vsel %vm1660, %v1644, %v1647
        %v1665 = vsel %vm1663, %v1653, 2102212464
        %v1666 = vsel %vm1662, %v1650, %v1665
        %v1667 = vsel %vm1661, %v1664, %v1666
        %v1668 = vsel %vm1660, %v1647, %v1650
        %v1669 = vsel %vm1663, %v1656, 920167782
        %v1670 = vsel %vm1662, %v1653, %v1669
        %v1671 = vsel %vm1661, %v1668, %v1670
        %v1672 = vsel %vm1660, %v1650, %v1653
        %v1673 = vsel %vm1663, %v1659, 1326507024
        %v1674 = vsel %vm1662, %v1656, %v1673
        %v1675 = vsel %vm1661, %v1672, %v1674
        %v1676 = vshll.u32 %v1636, 8
        %v1677 = vmul.u32.u64.compose %v1676, %v1675
        %v1678 = vextract.low.u32 %v1677
        %v1679 = vextract.high.u32 %v1677
        %v1680 = vmul.u32.u64.compose %v1676, %v1671
        %v1681 = vextract.low.u32 %v1680
        %v1682 = vextract.high.u32 %v1680
        %v1683 = vmul.u32 %v1676, %v1667
        %v1684 = vadd.s32 %v1679, %v1681
        %vm1685 = vc.u32 %v1679, %v1681
        %v1686 = vadd.s32 %v1682, 1
        %v1687 = vsel %vm1685, %v1686, %v1682
        %v1688 = vadd.s32 %v1683, %v1687
        %v1689 = vadd.s32 %v1688, 536870912
        %v1690 = vshrl.u32 %v1689, 30
        %v1691 = vshll.u32 %v1690, 30
        %v1692 = vsub.s32 %v1688, %v1691
        %vm1693 = vcmp.lt.s32.totalorder %v1692, 0
        %v1694 = vsub.s32 0, %v1692
        %v1695 = vsel %vm1693, %v1694, %v1692
        %v1696 = vclz %v1695
        %v1697 = vsub.s32 %v1696, 2
        %vm1698 = vcmp.gt.s32.totalorder 0, %v1697
        %v1699 = vsel %vm1698, 0, %v1697
        %v1700 = vsub.s32 32, %v1699
        %v1701 = vshll.u32 %v1692, %v1699
        %v1702 = vshrl.u32 %v1684, %v1700
        %v1703 = vor.u32 %v1701, %v1702
        %v1704 = vsub.s32 4294967266, %v1699
        %v1705 = vadd.s32 %v1704, 127
        %v1706 = vshll.u32 %v1705, 23
        %v1707 = vor.u32 4788187, %v1706
        %v1708 = vand.u32 2147483647, %v1707
        %v1710 = vcvt.s32.f32 %v1703
        %v1711 = vmul.f32 %v1710, %v1708
        %v1712 = vxor.u32 %v1711, 2147483648
        %v1713 = vsel %vm1630, %v1712, %v1711
        %v1714 = vsub.s32 4, %v1690
        %v1715 = vsel %vm1630, %v1714, %v1690
        %v1716 = vsel %vm1629, %v273, %v1713
        %v1717 = vsel %vm1629, 0, %v1715
        %v1718 = vcosq.f32.pop %v1716
        %v1719 = vsinq.f32.pop %v1716
        %vm1720 = vweird.f32 %v273
        %v1721 = vadd.s32 %v1717, 3
        %v1722 = vand.u32 %v1721, 3
        %vm1723 = vcmp.lt.s32.totalorder %v1722, 2
        %vm1724 = vcmp.eq.s32.totalorder %v1722, 0
        %v1725 = vxor.u32 %v1719, 2147483648
        %v1726 = vsel %vm1724, %v1718, %v1725
        %vm1727 = vcmp.eq.s32.totalorder %v1722, 2
        %v1728 = vxor.u32 %v1718, 2147483648
        %v1729 = vsel %vm1727, %v1728, %v1719
        %v1730 = vsel %vm1723, %v1726, %v1729
        %v1731 = vsel %vm1720, nan, %v1730
        %v1732 = vand.u32 2147483647, %v274
        %vm1733 = vcmp.le.f32.partialorder %v1732, 0.7853982
        %vm1734 = vcmp.lt.s32.totalorder %v274, 0
        %v1735 = vand.u32 %v274, 2139095040
        %v1736 = vshrl.u32 %v1735, 23
        %v1737 = vsub.s32 %v1736, 127
        %v1738 = vand.u32 2147483647, %v274
        %v1739 = vand.u32 %v1738, 8388607
        %v1740 = vor.u32 %v1739, 8388608
        %v1741 = vsub.s32 0, %v1740
        %v1742 = vadd.s32 %v1737, 1
        %vm1743 = vcmp.gt.s32.totalorder %v1742, 0
        %v1744 = vsel %vm1743, %v1742, 0
        %v1745 = vshrl.u32 %v1744, 5
        %v1746 = vand.u32 %v1744, 31
        %v1747 = vsub.s32 32, %v1746
        %v1748 = vshrl.u32 683565275, %v1747
        %v1749 = vshll.u32 683565275, %v1746
        %v1750 = vshrl.u32 2475754826, %v1747
        %v1751 = vor.u32 %v1749, %v1750
        %v1752 = vshll.u32 2475754826, %v1746
        %v1753 = vshrl.u32 2131351028, %v1747
        %v1754 = vor.u32 %v1752, %v1753
        %v1755 = vshll.u32 2131351028, %v1746
        %v1756 = vshrl.u32 2102212464, %v1747
        %v1757 = vor.u32 %v1755, %v1756
        %v1758 = vshll.u32 2102212464, %v1746
        %v1759 = vshrl.u32 920167782, %v1747
        %v1760 = vor.u32 %v1758, %v1759
        %v1761 = vshll.u32 920167782, %v1746
        %v1762 = vshrl.u32 1326507024, %v1747
        %v1763 = vor.u32 %v1761, %v1762
        %vm1764 = vcmp.lt.s32.totalorder %v1745, 1
        %vm1765 = vcmp.lt.s32.totalorder %v1745, 2
        %vm1766 = vcmp.lt.s32.totalorder %v1745, 3
        %vm1767 = vcmp.lt.s32.totalorder %v1745, 4
        %v1768 = vsel %vm1764, %v1748, %v1751
        %v1769 = vsel %vm1767, %v1757, 2102212464
        %v1770 = vsel %vm1766, %v1754, %v1769
        %v1771 = vsel %vm1765, %v1768, %v1770
        %v1772 = vsel %vm1764, %v1751, %v1754
        %v1773 = vsel %vm1767, %v1760, 920167782
        %v1774 = vsel %vm1766, %v1757, %v1773
        %v1775 = vsel %vm1765, %v1772, %v1774
        %v1776 = vsel %vm1764, %v1754, %v1757
        %v1777 = vsel %vm1767, %v1763, 1326507024
        %v1778 = vsel %vm1766, %v1760, %v1777
        %v1779 = vsel %vm1765, %v1776, %v1778
        %v1780 = vshll.u32 %v1740, 8
        %v1781 = vmul.u32.u64.compose %v1780, %v1779
        %v1782 = vextract.low.u32 %v1781
        %v1783 = vextract.high.u32 %v1781
        %v1784 = vmul.u32.u64.compose %v1780, %v1775
        %v1785 = vextract.low.u32 %v1784
        %v1786 = vextract.high.u32 %v1784
        %v1787 = vmul.u32 %v1780, %v1771
        %v1788 = vadd.s32 %v1783, %v1785
        %vm1789 = vc.u32 %v1783, %v1785
        %v1790 = vadd.s32 %v1786, 1
        %v1791 = vsel %vm1789, %v1790, %v1786
        %v1792 = vadd.s32 %v1787, %v1791
        %v1793 = vadd.s32 %v1792, 536870912
        %v1794 = vshrl.u32 %v1793, 30
        %v1795 = vshll.u32 %v1794, 30
        %v1796 = vsub.s32 %v1792, %v1795
        %vm1797 = vcmp.lt.s32.totalorder %v1796, 0
        %v1798 = vsub.s32 0, %v1796
        %v1799 = vsel %vm1797, %v1798, %v1796
        %v1800 = vclz %v1799
        %v1801 = vsub.s32 %v1800, 2
        %vm1802 = vcmp.gt.s32.totalorder 0, %v1801
        %v1803 = vsel %vm1802, 0, %v1801
        %v1804 = vsub.s32 32, %v1803
        %v1805 = vshll.u32 %v1796, %v1803
        %v1806 = vshrl.u32 %v1788, %v1804
        %v1807 = vor.u32 %v1805, %v1806
        %v1808 = vsub.s32 4294967266, %v1803
        %v1809 = vadd.s32 %v1808, 127
        %v1810 = vshll.u32 %v1809, 23
        %v1811 = vor.u32 4788187, %v1810
        %v1812 = vand.u32 2147483647, %v1811
        %v1814 = vcvt.s32.f32 %v1807
        %v1815 = vmul.f32 %v1814, %v1812
        %v1816 = vxor.u32 %v1815, 2147483648
        %v1817 = vsel %vm1734, %v1816, %v1815
        %v1818 = vsub.s32 4, %v1794
        %v1819 = vsel %vm1734, %v1818, %v1794
        %v1820 = vsel %vm1733, %v274, %v1817
        %v1821 = vsel %vm1733, 0, %v1819
        %v1822 = vcosq.f32.pop %v1820
        %v1823 = vsinq.f32.pop %v1820
        %vm1824 = vweird.f32 %v274
        %v1825 = vadd.s32 %v1821, 3
        %v1826 = vand.u32 %v1825, 3
        %vm1827 = vcmp.lt.s32.totalorder %v1826, 2
        %vm1828 = vcmp.eq.s32.totalorder %v1826, 0
        %v1829 = vxor.u32 %v1823, 2147483648
        %v1830 = vsel %vm1828, %v1822, %v1829
        %vm1831 = vcmp.eq.s32.totalorder %v1826, 2
        %v1832 = vxor.u32 %v1822, 2147483648
        %v1833 = vsel %vm1831, %v1832, %v1823
        %v1834 = vsel %vm1827, %v1830, %v1833
        %v1835 = vsel %vm1824, nan, %v1834
        %v1836 = vand.u32 2147483647, %v275
        %vm1837 = vcmp.le.f32.partialorder %v1836, 0.7853982
        %vm1838 = vcmp.lt.s32.totalorder %v275, 0
        %v1839 = vand.u32 %v275, 2139095040
        %v1840 = vshrl.u32 %v1839, 23
        %v1841 = vsub.s32 %v1840, 127
        %v1842 = vand.u32 2147483647, %v275
        %v1843 = vand.u32 %v1842, 8388607
        %v1844 = vor.u32 %v1843, 8388608
        %v1845 = vsub.s32 0, %v1844
        %v1846 = vadd.s32 %v1841, 1
        %vm1847 = vcmp.gt.s32.totalorder %v1846, 0
        %v1848 = vsel %vm1847, %v1846, 0
        %v1849 = vshrl.u32 %v1848, 5
        %v1850 = vand.u32 %v1848, 31
        %v1851 = vsub.s32 32, %v1850
        %v1852 = vshrl.u32 683565275, %v1851
        %v1853 = vshll.u32 683565275, %v1850
        %v1854 = vshrl.u32 2475754826, %v1851
        %v1855 = vor.u32 %v1853, %v1854
        %v1856 = vshll.u32 2475754826, %v1850
        %v1857 = vshrl.u32 2131351028, %v1851
        %v1858 = vor.u32 %v1856, %v1857
        %v1859 = vshll.u32 2131351028, %v1850
        %v1860 = vshrl.u32 2102212464, %v1851
        %v1861 = vor.u32 %v1859, %v1860
        %v1862 = vshll.u32 2102212464, %v1850
        %v1863 = vshrl.u32 920167782, %v1851
        %v1864 = vor.u32 %v1862, %v1863
        %v1865 = vshll.u32 920167782, %v1850
        %v1866 = vshrl.u32 1326507024, %v1851
        %v1867 = vor.u32 %v1865, %v1866
        %vm1868 = vcmp.lt.s32.totalorder %v1849, 1
        %vm1869 = vcmp.lt.s32.totalorder %v1849, 2
        %vm1870 = vcmp.lt.s32.totalorder %v1849, 3
        %vm1871 = vcmp.lt.s32.totalorder %v1849, 4
        %v1872 = vsel %vm1868, %v1852, %v1855
        %v1873 = vsel %vm1871, %v1861, 2102212464
        %v1874 = vsel %vm1870, %v1858, %v1873
        %v1875 = vsel %vm1869, %v1872, %v1874
        %v1876 = vsel %vm1868, %v1855, %v1858
        %v1877 = vsel %vm1871, %v1864, 920167782
        %v1878 = vsel %vm1870, %v1861, %v1877
        %v1879 = vsel %vm1869, %v1876, %v1878
        %v1880 = vsel %vm1868, %v1858, %v1861
        %v1881 = vsel %vm1871, %v1867, 1326507024
        %v1882 = vsel %vm1870, %v1864, %v1881
        %v1883 = vsel %vm1869, %v1880, %v1882
        %v1884 = vshll.u32 %v1844, 8
        %v1885 = vmul.u32.u64.compose %v1884, %v1883
        %v1886 = vextract.low.u32 %v1885
        %v1887 = vextract.high.u32 %v1885
        %v1888 = vmul.u32.u64.compose %v1884, %v1879
        %v1889 = vextract.low.u32 %v1888
        %v1890 = vextract.high.u32 %v1888
        %v1891 = vmul.u32 %v1884, %v1875
        %v1892 = vadd.s32 %v1887, %v1889
        %vm1893 = vc.u32 %v1887, %v1889
        %v1894 = vadd.s32 %v1890, 1
        %v1895 = vsel %vm1893, %v1894, %v1890
        %v1896 = vadd.s32 %v1891, %v1895
        %v1897 = vadd.s32 %v1896, 536870912
        %v1898 = vshrl.u32 %v1897, 30
        %v1899 = vshll.u32 %v1898, 30
        %v1900 = vsub.s32 %v1896, %v1899
        %vm1901 = vcmp.lt.s32.totalorder %v1900, 0
        %v1902 = vsub.s32 0, %v1900
        %v1903 = vsel %vm1901, %v1902, %v1900
        %v1904 = vclz %v1903
        %v1905 = vsub.s32 %v1904, 2
        %vm1906 = vcmp.gt.s32.totalorder 0, %v1905
        %v1907 = vsel %vm1906, 0, %v1905
        %v1908 = vsub.s32 32, %v1907
        %v1909 = vshll.u32 %v1900, %v1907
        %v1910 = vshrl.u32 %v1892, %v1908
        %v1911 = vor.u32 %v1909, %v1910
        %v1912 = vsub.s32 4294967266, %v1907
        %v1913 = vadd.s32 %v1912, 127
        %v1914 = vshll.u32 %v1913, 23
        %v1915 = vor.u32 4788187, %v1914
        %v1916 = vand.u32 2147483647, %v1915
        %v1918 = vcvt.s32.f32 %v1911
        %v1919 = vmul.f32 %v1918, %v1916
        %v1920 = vxor.u32 %v1919, 2147483648
        %v1921 = vsel %vm1838, %v1920, %v1919
        %v1922 = vsub.s32 4, %v1898
        %v1923 = vsel %vm1838, %v1922, %v1898
        %v1924 = vsel %vm1837, %v275, %v1921
        %v1925 = vsel %vm1837, 0, %v1923
        %v1926 = vcosq.f32.pop %v1924
        %v1927 = vsinq.f32.pop %v1924
        %vm1928 = vweird.f32 %v275
        %v1929 = vadd.s32 %v1925, 3
        %v1930 = vand.u32 %v1929, 3
        %vm1931 = vcmp.lt.s32.totalorder %v1930, 2
        %vm1932 = vcmp.eq.s32.totalorder %v1930, 0
        %v1933 = vxor.u32 %v1927, 2147483648
        %v1934 = vsel %vm1932, %v1926, %v1933
        %vm1935 = vcmp.eq.s32.totalorder %v1930, 2
        %v1936 = vxor.u32 %v1926, 2147483648
        %v1937 = vsel %vm1935, %v1936, %v1927
        %v1938 = vsel %vm1931, %v1934, %v1937
        %v1939 = vsel %vm1928, nan, %v1938
        %1940 = vst [vmem:[%s164] sm:$0xff] %v379
        %1941 = vst [vmem:[%s164 + $0x8] sm:$0xff] %v483
        %1942 = vst [vmem:[%s164 + $0x10] sm:$0xff] %v587
        %1943 = vst [vmem:[%s164 + $0x18] sm:$0xff] %v691
        %1944 = vst [vmem:[%s164 + $0x20] sm:$0xff] %v795
        %1945 = vst [vmem:[%s164 + $0x28] sm:$0xff] %v899
        %1946 = vst [vmem:[%s164 + $0x30] sm:$0xff] %v1003
        %1947 = vst [vmem:[%s164 + $0x38] sm:$0xff] %v1107
        %1948 = vst [vmem:[%s164 + $0x40] sm:$0xff] %v1211
        %1949 = vst [vmem:[%s164 + $0x48] sm:$0xff] %v1315
        %1950 = vst [vmem:[%s164 + $0x50] sm:$0xff] %v1419
        %1951 = vst [vmem:[%s164 + $0x58] sm:$0xff] %v1523
        %1952 = vst [vmem:[%s164 + $0x60] sm:$0xff] %v1627
        %1953 = vst [vmem:[%s164 + $0x68] sm:$0xff] %v1731
        %1954 = vst [vmem:[%s164 + $0x70] sm:$0xff] %v1835
        %1955 = vst [vmem:[%s164 + $0x78] sm:$0xff] %v1939
        %s1956 = sand.u32 %s93, 1
        %s1957 = scalar_lea.sflag [#allocation3], %s1956
        %s1958 = sand.u32 %s93, 1
        %s1959 = smul.addr %s1958, 128
        %s1960 = scalar_lea.vmem [#allocation2], %s1959
        // Predicated region
        $region33: #{tpu_custom_call.1} parent=31 // pred_check
          %p1961 = pneg %p103
        $region34: #{tpu_custom_call.1} parent=31 // pred_check_branch
          %1963 = sbr.rel (%p1961) target = $region36
        $region35: #{tpu_custom_call.1} parent=31 // pred_region
          %s1964 = smul.u32 8, %s17
          %s1966 = ssub.s32 2048, 2048
          %1967 = vsyncadd %s1957, %s1966
          %s1968 = smul.addr %s1964, 2
          %s1969 = smul.addr %s1968, 128
          %s1970 = scalar_lea.hbm %s3, %s1969
          %s1971 = sshll.u32 %s1960, 4
          %s1972 = int_to_ptr.vmem [resolvable:$true] %s1971
          %1977 = dma.vmem_to_hbm [thread:$0]  %s1972, 2048, %s1970, %s1957, 256, 256, 16
        $region36: #{tpu_custom_call.1} parent=31 // pred_fallthru
          _
      $region32: #{tpu_custom_call.1} parent=5 // pred_fallthru
        _
      %p1978 = scmp.le.s32.totalorder 2, %s12
      // Predicated region
      $region37: #{tpu_custom_call.1} parent=5 // pred_check
        %p1979 = pneg %p1978
      $region38: #{tpu_custom_call.1} parent=5 // pred_check_branch
        %1981 = sbr.rel (%p1979) target = $region40
      $region39: #{tpu_custom_call.1} parent=5 // pred_region
        %s1982 = ssub.s32 %s12, 2
        // Predicated region
        $region41: #{tpu_custom_call.1} parent=39 // pred_check
          %p1983 = pneg %p109
        $region42: #{tpu_custom_call.1} parent=39 // pred_check_branch
          %1985 = sbr.rel (%p1983) target = $region44
        $region43: #{tpu_custom_call.1} parent=39 // pred_region
          %s1986 = sand.u32 %s94, 1
          %s1987 = scalar_lea.sflag [#allocation3], %s1986
          %s1988 = sand.u32 %s94, 1
          %s1989 = smul.addr %s1988, 128
          %s1990 = scalar_lea.vmem [#allocation2], %s1989
          %1991 = dma.done %s1987, 2048
        $region44: #{tpu_custom_call.1} parent=39 // pred_fallthru
          _
      $region40: #{tpu_custom_call.1} parent=5 // pred_fallthru
        _
    $region6: #{tpu_custom_call.1} parent=1 // loop_footer
      %s16 = sadd.s32 1, %s12
    $region7: #{tpu_custom_call.1} parent=1 // loop_footer_branch
      %11 = sbr.rel target = $region3
    $region8: #{tpu_custom_call.1} parent=1 // loop_exit
      _
    %1992 = vsyncpa [#allocation3], 1
    %s1993 = scalar_lea.sflag [#allocation3], 1
    %1994 = vsyncpa %s1993, 1

</llo_original>
